<compile_context>
chip_gen: v7x
topology: tpu7x:2x2x1
jax: 0.10.0
libtpu: 0.0.40
codegen_flags: <defaults>
</compile_context>

<pallas_src>
import jax
import jax.numpy as jnp
from jax.experimental import pallas as pl
from jax.experimental.pallas import tpu as pltpu


def _decoder_kernel(sym_ref, wf_ref, b1_ref, w2T_ref, b2_ref, out_ref):
    """Fused (embed+Linear1) -> ReLU -> Linear2 -> Sigmoid for one column tile.

    sym_ref : (Bp, L*S)   f32   flattened symbols (batch padded to sublane mult.)
    wf_ref  : (L*S, H)    f32   fused embed+decoder[0] weight
    b1_ref  : (1, H)      f32   fused bias
    w2T_ref : (H, TN)     bf16  decoder[2] weight column tile (transposed, padded)
    b2_ref  : (1, TN)     f32   decoder[2] bias column tile (padded)
    out_ref : (Bp, TN)    f32
    """
    # First decoder Linear (embed layer folded in) + ReLU.  Tiny; recomputed
    # per column tile rather than staged through scratch.
    h = jnp.dot(sym_ref[...], wf_ref[...], preferred_element_type=jnp.float32)
    h = jnp.maximum(h + b1_ref[...], 0.0)

    # Second decoder Linear (bf16 weights, f32 accumulate) + Sigmoid.
    o = jnp.dot(h.astype(w2T_ref.dtype), w2T_ref[...],
                preferred_element_type=jnp.float32) + b2_ref[...]
    out_ref[...] = jax.nn.sigmoid(o)


def _num_col_tiles(npad):
    """2 column tiles on v7x (2 TCs/chip), 1 elsewhere (v5e/v6e single TC)."""
    tiles = 1
    try:
        kind = jax.devices()[0].device_kind.lower()
        if "v7" in kind:
            tiles = 2
    except Exception:
        tiles = 1
    if npad % tiles != 0 or (npad // tiles) % 128 != 0:
        tiles = 1
    return tiles


def make_decoder(params, num_symbols=8, symbol_length=8,
                 output_shape=(1, 47, 41)):
    """Preprocess weights ONCE and return a jitted forward(symbols) closure."""
    we, be = params["we"], params["be"]          # (E, S), (E,)
    w1, b1 = params["w1"], params["b1"]          # (H, L*E), (H,)
    w2, b2 = params["w2"], params["b2"]          # (N, H), (N,)

    L, S = symbol_length, num_symbols
    E = we.shape[0]
    H = w1.shape[0]
    N = w2.shape[0]
    assert N == output_shape[0] * output_shape[1] * output_shape[2]
    Npad = ((N + 127) // 128) * 128              # lane-dense output width
    LS = L * S

    # --- one-time weight preprocessing (not on the per-call hot path) -------
    # w1r[l, e, h] == w1[h, l*E + e]  (matches the PyTorch .view(B, -1) flatten)
    w1r = w1.T.reshape(L, E, H)
    wf = jnp.einsum("es,leh->lsh", we, w1r).reshape(LS, H).astype(jnp.float32)
    b1f = (b1 + jnp.einsum("e,leh->h", be, w1r)).reshape(1, H).astype(jnp.float32)
    w2T = (jnp.zeros((H, Npad), jnp.bfloat16)
           .at[:, :N].set(w2.T.astype(jnp.bfloat16)))
    b2p = jnp.zeros((1, Npad), jnp.float32).at[0, :N].set(b2)

    num_tiles = _num_col_tiles(Npad)
    tn = Npad // num_tiles

    @jax.jit
    def forward(symbols):
        B = symbols.shape[0]
        Bp = max(8, ((B + 7) // 8) * 8)          # sublane-full batch
        x = symbols.reshape(B, LS).astype(jnp.float32)
        if Bp != B:
            x = jnp.pad(x, ((0, Bp - B), (0, 0)))

        out = pl.pallas_call(
            _decoder_kernel,
            out_shape=jax.ShapeDtypeStruct((Bp, Npad), jnp.float32),
            grid=(num_tiles,),
            in_specs=[
                pl.BlockSpec((Bp, LS), lambda i: (0, 0)),
                pl.BlockSpec((LS, H), lambda i: (0, 0)),
                pl.BlockSpec((1, H), lambda i: (0, 0)),
                pl.BlockSpec((H, tn), lambda i: (0, i)),
                pl.BlockSpec((1, tn), lambda i: (0, i)),
            ],
            out_specs=pl.BlockSpec((Bp, tn), lambda i: (0, i)),
            compiler_params=pltpu.CompilerParams(
                dimension_semantics=("parallel",)),
        )(x, wf, b1f, w2T, b2p)

        return out[:B, :N].reshape(B, *output_shape)

    return forward


def init_params(key, num_symbols=8, symbol_length=8, embed_dim=64,
                output_shape=(1, 47, 41)):
    """Deterministic synthetic parameters (PyTorch nn.Linear-style uniform init)."""
    C, Hh, Ww = output_shape
    N = C * Hh * Ww
    keys = jax.random.split(key, 6)

    def lin(kw, kb, out_f, in_f):
        bound = 1.0 / jnp.sqrt(in_f)
        w = jax.random.uniform(kw, (out_f, in_f), jnp.float32, -bound, bound)
        b = jax.random.uniform(kb, (out_f,), jnp.float32, -bound, bound)
        return w, b

    we, be = lin(keys[0], keys[1], embed_dim, num_symbols)
    w1, b1 = lin(keys[2], keys[3], 256, symbol_length * embed_dim)
    w2, b2 = lin(keys[4], keys[5], N, 256)
    return {"we": we, "be": be, "w1": w1, "b1": b1, "w2": w2, "b2": b2}


def _reference(symbols, params, output_shape=(1, 47, 41)):
    """Pure-JAX f32 reference mirroring the PyTorch forward."""
    B = symbols.shape[0]
    x = symbols @ params["we"].T + params["be"]          # (B, L, E)
    x = x.reshape(B, -1)                                 # (B, L*E)
    x = jnp.maximum(x @ params["w1"].T + params["b1"], 0.0)
    x = jax.nn.sigmoid(x @ params["w2"].T + params["b2"])
    return x.reshape(B, *output_shape)


if __name__ == "__main__":
    key = jax.random.PRNGKey(0)
    k_param, k_in = jax.random.split(key)

    B, L, S = 2, 8, 8                                    # batch, symbol_length, num_symbols
    params = init_params(k_param, num_symbols=S, symbol_length=L,
                         embed_dim=64, output_shape=(1, 47, 41))
    symbols = jax.random.normal(k_in, (B, L, S), jnp.float32)

    decoder = make_decoder(params, num_symbols=S, symbol_length=L,
                           output_shape=(1, 47, 41))
    out = decoder(symbols)
    out = jax.block_until_ready(out)

    ref = _reference(symbols, params)
    assert out.shape == (B, 1, 47, 41), out.shape
    # Tolerance loosened for the bf16 second-layer weights (sigmoid output in [0,1]).
    assert jnp.allclose(out, ref, atol=5e-3, rtol=5e-3), \
        float(jnp.max(jnp.abs(out - ref)))

    print("KERNEL_OK")
</pallas_src>

<mosaic_0001>
module attributes {stable_mosaic.version = 11 : i64} {
  func.func @_decoder_kernel(%arg0: i32, %arg1: memref<8x64xf32, #tpu.memory_space<vmem>>, %arg2: memref<64x256xf32, #tpu.memory_space<vmem>>, %arg3: memref<1x256xf32, #tpu.memory_space<vmem>>, %arg4: memref<256x2048xbf16, #tpu.memory_space<vmem>>, %arg5: memref<1x2048xf32, #tpu.memory_space<vmem>>, %arg6: memref<8x2048xf32, #tpu.memory_space<vmem>>) attributes {dimension_semantics = [#tpu.dimension_semantics<parallel>], iteration_bounds = array<i64: 1>, scalar_prefetch = 0 : i64, scratch_operands = 0 : i64, tpu.core_type = #tpu.core_type<tc>, window_params = [{pipeline_mode = #tpu.pipeline_mode<synchronous>, transform_indices = @transform_0, window_bounds = array<i64: 8, 64>}, {pipeline_mode = #tpu.pipeline_mode<synchronous>, transform_indices = @transform_1, window_bounds = array<i64: 64, 256>}, {pipeline_mode = #tpu.pipeline_mode<synchronous>, transform_indices = @transform_2, window_bounds = array<i64: 1, 256>}, {transform_indices = @transform_3, window_bounds = array<i64: 256, 2048>}, {transform_indices = @transform_4, window_bounds = array<i64: 1, 2048>}, {transform_indices = @transform_5, window_bounds = array<i64: 8, 2048>}]} {
    %c0 = arith.constant 0 : index
    %c0_0 = arith.constant 0 : index
    %0 = vector.load %arg1[%c0, %c0_0] : memref<8x64xf32, #tpu.memory_space<vmem>>, vector<8x64xf32>
    %c0_1 = arith.constant 0 : index
    %c0_2 = arith.constant 0 : index
    %1 = vector.load %arg2[%c0_1, %c0_2] : memref<64x256xf32, #tpu.memory_space<vmem>>, vector<64x256xf32>
    %cst = arith.constant dense<0.000000e+00> : vector<8x256xf32>
    %2 = tpu.matmul %0, %1, %cst {dimension_numbers = #tpu.dot_dimension_numbers<[1], [0], [0], [1], [0, 0, 1, 1], [], []>} : vector<8x64xf32>, vector<64x256xf32>, vector<8x256xf32> -> vector<8x256xf32>
    %c0_3 = arith.constant 0 : index
    %c0_4 = arith.constant 0 : index
    %3 = vector.load %arg3[%c0_3, %c0_4] : memref<1x256xf32, #tpu.memory_space<vmem>>, vector<1x256xf32>
    %4 = vector.broadcast %3 : vector<1x256xf32> to vector<8x256xf32>
    %5 = arith.addf %2, %4 : vector<8x256xf32>
    %cst_5 = arith.constant 0.000000e+00 : f32
    %6 = vector.broadcast %cst_5 : f32 to vector<8x256xf32>
    %7 = arith.maximumf %5, %6 : vector<8x256xf32>
    %8 = arith.truncf %7 : vector<8x256xf32> to vector<8x256xbf16>
    %c0_6 = arith.constant 0 : index
    %c0_7 = arith.constant 0 : index
    %9 = vector.load %arg4[%c0_6, %c0_7] : memref<256x2048xbf16, #tpu.memory_space<vmem>>, vector<256x2048xbf16>
    %cst_8 = arith.constant dense<0.000000e+00> : vector<8x2048xf32>
    %10 = tpu.matmul %8, %9, %cst_8 {dimension_numbers = #tpu.dot_dimension_numbers<[1], [0], [0], [1], [0, 0, 1, 1], [], []>} : vector<8x256xbf16>, vector<256x2048xbf16>, vector<8x2048xf32> -> vector<8x2048xf32>
    %c0_9 = arith.constant 0 : index
    %c0_10 = arith.constant 0 : index
    %11 = vector.load %arg5[%c0_9, %c0_10] : memref<1x2048xf32, #tpu.memory_space<vmem>>, vector<1x2048xf32>
    %12 = vector.broadcast %11 : vector<1x2048xf32> to vector<8x2048xf32>
    %13 = arith.addf %10, %12 : vector<8x2048xf32>
    %14 = arith.negf %13 : vector<8x2048xf32>
    %15 = math.exp %14 : vector<8x2048xf32>
    %cst_11 = arith.constant 1.000000e+00 : f32
    %16 = vector.broadcast %cst_11 : f32 to vector<8x2048xf32>
    %17 = arith.addf %16, %15 : vector<8x2048xf32>
    %18 = arith.divf %16, %17 : vector<8x2048xf32>
    %c0_12 = arith.constant 0 : index
    %c0_13 = arith.constant 0 : index
    %19 = vector.load %arg6[%c0_12, %c0_13] : memref<8x2048xf32, #tpu.memory_space<vmem>>, vector<8x2048xf32>
    tpu.vector_store %arg6[%c0_12, %c0_13], %18 {strides = array<i32>} : memref<8x2048xf32, #tpu.memory_space<vmem>>, vector<8x2048xf32>,
    return
  }
  func.func @transform_0(%arg0: i32) -> (i32, i32) {
    %c0_i32 = arith.constant 0 : i32
    %c0_i32_0 = arith.constant 0 : i32
    %c0_i32_1 = arith.constant 0 : i32
    return %c0_i32, %c0_i32_0 : i32, i32
  }
  func.func @transform_1(%arg0: i32) -> (i32, i32) {
    %c0_i32 = arith.constant 0 : i32
    %c0_i32_0 = arith.constant 0 : i32
    %c0_i32_1 = arith.constant 0 : i32
    return %c0_i32, %c0_i32_0 : i32, i32
  }
  func.func @transform_2(%arg0: i32) -> (i32, i32) {
    %c0_i32 = arith.constant 0 : i32
    %c0_i32_0 = arith.constant 0 : i32
    %c0_i32_1 = arith.constant 0 : i32
    return %c0_i32, %c0_i32_0 : i32, i32
  }
  func.func @transform_3(%arg0: i32) -> (i32, i32) {
    %c0_i32 = arith.constant 0 : i32
    %c0_i32_0 = arith.constant 0 : i32
    return %c0_i32, %arg0 : i32, i32
  }
  func.func @transform_4(%arg0: i32) -> (i32, i32) {
    %c0_i32 = arith.constant 0 : i32
    %c0_i32_0 = arith.constant 0 : i32
    return %c0_i32, %arg0 : i32, i32
  }
  func.func @transform_5(%arg0: i32) -> (i32, i32) {
    %c0_i32 = arith.constant 0 : i32
    %c0_i32_0 = arith.constant 0 : i32
    return %c0_i32, %arg0 : i32, i32
  }
}

</mosaic_0001>

<llo_original>
// kernel: forward.1
$region0: #{forward.1}
  #allocation0 [shape = 'u32[]', space=smem, size = 0x4, offset = 0x4, fixed_abs, tag = 'smem constant byte address 0x4 - core index']
  #allocation1 [shape = 'u32[144,128]{1,0:T(1,128)}', space=vmem, size = 0x12000, scoped, tag = 'internal scratch']
  %s0 = inlined_call_operand.vmem [shape: f32[8,64], index: 0, kind: input, shape index: {}]
  %s1 = inlined_call_operand.vmem [shape: f32[64,256], index: 1, kind: input, shape index: {}]
  %s2 = inlined_call_operand.vmem [shape: f32[1,256], index: 2, kind: input, shape index: {}]
  %s3 = inlined_call_operand.vmem [shape: bf16[256,2048], index: 3, kind: input, shape index: {}]
  %s4 = inlined_call_operand.vmem [shape: f32[1,2048], index: 4, kind: input, shape index: {}]
  %s5 = inlined_call_operand.vmem [shape: f32[8,2048], index: 5, kind: output, shape index: {}]
  %s6 = sld [smem:[#allocation0]]
  $region30: #{forward.1} parent=0
    _
  %s8 = ssub.s32 1, %s6
  %s9 = scalar_select 0, %s8, %s6
  // Predicated region
  $region2: #{forward.1} parent=0 // pred_check
    _
  $region3: #{forward.1} parent=0 // pred_check_branch
    %11 = sbr.rel (0) target = $region5
  $region4: #{forward.1} parent=0 // pred_region
    _
  $region5: #{forward.1} parent=0 // pred_fallthru
    _
  // Predicated region
  $region6: #{forward.1} parent=0 // pred_check
    _
  $region7: #{forward.1} parent=0 // pred_check_branch
    %13 = sbr.rel (0) target = $region9
  $region8: #{forward.1} parent=0 // pred_region
    _
  $region9: #{forward.1} parent=0 // pred_fallthru
    _
  // Predicated region
  $region10: #{forward.1} parent=0 // pred_check
    _
  $region11: #{forward.1} parent=0 // pred_check_branch
    %15 = sbr.rel (0) target = $region13
  $region12: #{forward.1} parent=0 // pred_region
    _
  $region13: #{forward.1} parent=0 // pred_fallthru
    _
  // Predicated region
  $region14: #{forward.1} parent=0 // pred_check
    _
  $region15: #{forward.1} parent=0 // pred_check_branch
    %17 = sbr.rel (0) target = $region17
  $region16: #{forward.1} parent=0 // pred_region
    _
  $region17: #{forward.1} parent=0 // pred_fallthru
    _
  // Predicated region
  $region18: #{forward.1} parent=0 // pred_check
    _
  $region19: #{forward.1} parent=0 // pred_check_branch
    %19 = sbr.rel (0) target = $region21
  $region20: #{forward.1} parent=0 // pred_region
    _
  $region21: #{forward.1} parent=0 // pred_fallthru
    _
  %v20 = vld [vmem:[%s0] sm:$0xff]
  %v21 = vld [vmem:[%s1] sm:$0xff]
  %v22 = vld [vmem:[%s1 + $0x8] sm:$0xff]
  %v23 = vld [vmem:[%s1 + $0x10] sm:$0xff]
  %v24 = vld [vmem:[%s1 + $0x18] sm:$0xff]
  %v25 = vld [vmem:[%s1 + $0x20] sm:$0xff]
  %v26 = vld [vmem:[%s1 + $0x28] sm:$0xff]
  %v27 = vld [vmem:[%s1 + $0x30] sm:$0xff]
  %v28 = vld [vmem:[%s1 + $0x38] sm:$0xff]
  %v29 = vld [vmem:[%s1 + $0x40] sm:$0xff]
  %v30 = vld [vmem:[%s1 + $0x48] sm:$0xff]
  %v31 = vld [vmem:[%s1 + $0x50] sm:$0xff]
  %v32 = vld [vmem:[%s1 + $0x58] sm:$0xff]
  %v33 = vld [vmem:[%s1 + $0x60] sm:$0xff]
  %v34 = vld [vmem:[%s1 + $0x68] sm:$0xff]
  %v35 = vld [vmem:[%s1 + $0x70] sm:$0xff]
  %v36 = vld [vmem:[%s1 + $0x78] sm:$0xff]
  %v37 = vld [vmem:[%s2] sm:$0x3]
  %v39 = vlaneseq
  %v40 = vshrl.u32 %v39, 7
  %v41 = vsub.s32 0, %v40
  %v42 = vrot.slane %v37, %v41
  %v43 = vlaneseq
  %v44 = vshrl.u32 %v43, 7
  %v45 = vsub.s32 1, %v44
  %v46 = vrot.slane %v37, %v45
  %vm49 = vcmask 523264
  %v51 = vsel %vm49, %v20, 0
  %53 = vmatprep.subr.mxu0 %v22
  %54 = vmatpush1.msra.mxu0 %v21
  %55 = vmatprep.subr.mxu0 %v24
  %56 = vmatpush1.msra.mxu0 %v23
  %57 = vmatprep.subr.mxu0 %v26
  %58 = vmatpush1.msra.mxu0 %v25
  %59 = vmatprep.subr.mxu0 %v28
  %60 = vmatpush1.msra.mxu0 %v27
  %61 = vmatprep.subr.mxu0 %v30
  %62 = vmatpush1.msra.mxu0 %v29
  %63 = vmatprep.subr.mxu0 %v32
  %64 = vmatpush1.msra.mxu0 %v31
  %65 = vmatprep.subr.mxu0 %v34
  %66 = vmatpush1.msra.mxu0 %v33
  %67 = vmatprep.subr.mxu0 %v36
  %68 = vmatpush1.msra.mxu0 %v35
  %69 = vmatprep.subr.mxu0 0.0
  %70 = vmatpush1.msra.mxu0 0.0
  %71 = vmatprep.subr.mxu0 0.0
  %72 = vmatpush1.msra.mxu0 0.0
  %73 = vmatprep.subr.mxu0 0.0
  %74 = vmatpush1.msra.mxu0 0.0
  %75 = vmatprep.subr.mxu0 0.0
  %76 = vmatpush1.msra.mxu0 0.0
  %77 = vmatprep.subr.mxu0 0.0
  %78 = vmatpush1.msra.mxu0 0.0
  %79 = vmatprep.subr.mxu0 0.0
  %80 = vmatpush1.msra.mxu0 0.0
  %81 = vmatprep.subr.mxu0 0.0
  %82 = vmatpush1.msra.mxu0 0.0
  %83 = vmatprep.subr.mxu0 0.0
  %84 = vmatpush1.msra.mxu0 0.0
  %85 = vmatprep.subr.mxu0 0.0
  %86 = vmatpush1.msra.mxu0 0.0
  %87 = vmatprep.subr.mxu0 0.0
  %88 = vmatpush1.msra.mxu0 0.0
  %89 = vmatprep.subr.mxu0 0.0
  %90 = vmatpush1.msra.mxu0 0.0
  %91 = vmatprep.subr.mxu0 0.0
  %92 = vmatpush1.msra.mxu0 0.0
  %93 = vmatprep.subr.mxu0 0.0
  %94 = vmatpush1.msra.mxu0 0.0
  %95 = vmatprep.subr.mxu0 0.0
  %96 = vmatpush1.msra.mxu0 0.0
  %97 = vmatprep.subr.mxu0 0.0
  %98 = vmatpush1.msra.mxu0 0.0
  %99 = vmatprep.subr.mxu0 0.0
  %100 = vmatpush1.msra.mxu0 0.0
  %101 = vmatprep.subr.mxu0 0.0
  %102 = vmatpush1.msra.mxu0 0.0
  %103 = vmatprep.subr.mxu0 0.0
  %104 = vmatpush1.msra.mxu0 0.0
  %105 = vmatprep.subr.mxu0 0.0
  %106 = vmatpush1.msra.mxu0 0.0
  %107 = vmatprep.subr.mxu0 0.0
  %108 = vmatpush1.msra.mxu0 0.0
  %109 = vmatprep.subr.mxu0 0.0
  %110 = vmatpush1.msra.mxu0 0.0
  %111 = vmatprep.subr.mxu0 0.0
  %112 = vmatpush1.msra.mxu0 0.0
  %113 = vmatprep.subr.mxu0 0.0
  %114 = vmatpush1.msra.mxu0 0.0
  %115 = vmatprep.subr.mxu0 0.0
  %116 = vmatpush1.msra.mxu0 0.0
  %117 = vmatprep.mubr.f32.mxu0 0.0
  %118 = vmatmul.mubr.f32.gmra.mrb[0].mxu0 %v51
  %v119 = vpop.f32.mrb[0].mxu0
  %v120 = vadd.f32 %v42, %v119
  %v121 = vpop.f32.mrb[0].mxu0
  %v122 = vadd.f32 %v46, %v121
  %123 = vdwg.mxu0
  %v124 = vmax.f32 %v120, 0.0
  %v125 = vmax.f32 %v122, 0.0
  %v126 = vpack.c.bf16 %v124, %v124
  %v127 = vpack.c.bf16 %v125, %v125
  %v128 = vld [vmem:[%s3] sm:$0xff]
  %v129 = vld [vmem:[%s3 + $0x8] sm:$0xff]
  %v130 = vld [vmem:[%s3 + $0x10] sm:$0xff]
  %v131 = vld [vmem:[%s3 + $0x18] sm:$0xff]
  %v132 = vld [vmem:[%s3 + $0x20] sm:$0xff]
  %v133 = vld [vmem:[%s3 + $0x28] sm:$0xff]
  %v134 = vld [vmem:[%s3 + $0x30] sm:$0xff]
  %v135 = vld [vmem:[%s3 + $0x38] sm:$0xff]
  %v136 = vld [vmem:[%s3 + $0x40] sm:$0xff]
  %v137 = vld [vmem:[%s3 + $0x48] sm:$0xff]
  %v138 = vld [vmem:[%s3 + $0x50] sm:$0xff]
  %v139 = vld [vmem:[%s3 + $0x58] sm:$0xff]
  %v140 = vld [vmem:[%s3 + $0x60] sm:$0xff]
  %v141 = vld [vmem:[%s3 + $0x68] sm:$0xff]
  %v142 = vld [vmem:[%s3 + $0x70] sm:$0xff]
  %v143 = vld [vmem:[%s3 + $0x78] sm:$0xff]
  %v144 = vld [vmem:[%s3 + $0x80] sm:$0xff]
  %v145 = vld [vmem:[%s3 + $0x88] sm:$0xff]
  %v146 = vld [vmem:[%s3 + $0x90] sm:$0xff]
  %v147 = vld [vmem:[%s3 + $0x98] sm:$0xff]
  %v148 = vld [vmem:[%s3 + $0xa0] sm:$0xff]
  %v149 = vld [vmem:[%s3 + $0xa8] sm:$0xff]
  %v150 = vld [vmem:[%s3 + $0xb0] sm:$0xff]
  %v151 = vld [vmem:[%s3 + $0xb8] sm:$0xff]
  %v152 = vld [vmem:[%s3 + $0xc0] sm:$0xff]
  %v153 = vld [vmem:[%s3 + $0xc8] sm:$0xff]
  %v154 = vld [vmem:[%s3 + $0xd0] sm:$0xff]
  %v155 = vld [vmem:[%s3 + $0xd8] sm:$0xff]
  %v156 = vld [vmem:[%s3 + $0xe0] sm:$0xff]
  %v157 = vld [vmem:[%s3 + $0xe8] sm:$0xff]
  %v158 = vld [vmem:[%s3 + $0xf0] sm:$0xff]
  %v159 = vld [vmem:[%s3 + $0xf8] sm:$0xff]
  %v160 = vld [vmem:[%s3 + $0x100] sm:$0xff]
  %v161 = vld [vmem:[%s3 + $0x108] sm:$0xff]
  %v162 = vld [vmem:[%s3 + $0x110] sm:$0xff]
  %v163 = vld [vmem:[%s3 + $0x118] sm:$0xff]
  %v164 = vld [vmem:[%s3 + $0x120] sm:$0xff]
  %v165 = vld [vmem:[%s3 + $0x128] sm:$0xff]
  %v166 = vld [vmem:[%s3 + $0x130] sm:$0xff]
  %v167 = vld [vmem:[%s3 + $0x138] sm:$0xff]
  %v168 = vld [vmem:[%s3 + $0x140] sm:$0xff]
  %v169 = vld [vmem:[%s3 + $0x148] sm:$0xff]
  %v170 = vld [vmem:[%s3 + $0x150] sm:$0xff]
  %v171 = vld [vmem:[%s3 + $0x158] sm:$0xff]
  %v172 = vld [vmem:[%s3 + $0x160] sm:$0xff]
  %v173 = vld [vmem:[%s3 + $0x168] sm:$0xff]
  %v174 = vld [vmem:[%s3 + $0x170] sm:$0xff]
  %v175 = vld [vmem:[%s3 + $0x178] sm:$0xff]
  %v176 = vld [vmem:[%s3 + $0x180] sm:$0xff]
  %v177 = vld [vmem:[%s3 + $0x188] sm:$0xff]
  %v178 = vld [vmem:[%s3 + $0x190] sm:$0xff]
  %v179 = vld [vmem:[%s3 + $0x198] sm:$0xff]
  %v180 = vld [vmem:[%s3 + $0x1a0] sm:$0xff]
  %v181 = vld [vmem:[%s3 + $0x1a8] sm:$0xff]
  %v182 = vld [vmem:[%s3 + $0x1b0] sm:$0xff]
  %v183 = vld [vmem:[%s3 + $0x1b8] sm:$0xff]
  %v184 = vld [vmem:[%s3 + $0x1c0] sm:$0xff]
  %v185 = vld [vmem:[%s3 + $0x1c8] sm:$0xff]
  %v186 = vld [vmem:[%s3 + $0x1d0] sm:$0xff]
  %v187 = vld [vmem:[%s3 + $0x1d8] sm:$0xff]
  %v188 = vld [vmem:[%s3 + $0x1e0] sm:$0xff]
  %v189 = vld [vmem:[%s3 + $0x1e8] sm:$0xff]
  %v190 = vld [vmem:[%s3 + $0x1f0] sm:$0xff]
  %v191 = vld [vmem:[%s3 + $0x1f8] sm:$0xff]
  %v192 = vld [vmem:[%s3 + $0x200] sm:$0xff]
  %v193 = vld [vmem:[%s3 + $0x208] sm:$0xff]
  %v194 = vld [vmem:[%s3 + $0x210] sm:$0xff]
  %v195 = vld [vmem:[%s3 + $0x218] sm:$0xff]
  %v196 = vld [vmem:[%s3 + $0x220] sm:$0xff]
  %v197 = vld [vmem:[%s3 + $0x228] sm:$0xff]
  %v198 = vld [vmem:[%s3 + $0x230] sm:$0xff]
  %v199 = vld [vmem:[%s3 + $0x238] sm:$0xff]
  %v200 = vld [vmem:[%s3 + $0x240] sm:$0xff]
  %v201 = vld [vmem:[%s3 + $0x248] sm:$0xff]
  %v202 = vld [vmem:[%s3 + $0x250] sm:$0xff]
  %v203 = vld [vmem:[%s3 + $0x258] sm:$0xff]
  %v204 = vld [vmem:[%s3 + $0x260] sm:$0xff]
  %v205 = vld [vmem:[%s3 + $0x268] sm:$0xff]
  %v206 = vld [vmem:[%s3 + $0x270] sm:$0xff]
  %v207 = vld [vmem:[%s3 + $0x278] sm:$0xff]
  %v208 = vld [vmem:[%s3 + $0x280] sm:$0xff]
  %v209 = vld [vmem:[%s3 + $0x288] sm:$0xff]
  %v210 = vld [vmem:[%s3 + $0x290] sm:$0xff]
  %v211 = vld [vmem:[%s3 + $0x298] sm:$0xff]
  %v212 = vld [vmem:[%s3 + $0x2a0] sm:$0xff]
  %v213 = vld [vmem:[%s3 + $0x2a8] sm:$0xff]
  %v214 = vld [vmem:[%s3 + $0x2b0] sm:$0xff]
  %v215 = vld [vmem:[%s3 + $0x2b8] sm:$0xff]
  %v216 = vld [vmem:[%s3 + $0x2c0] sm:$0xff]
  %v217 = vld [vmem:[%s3 + $0x2c8] sm:$0xff]
  %v218 = vld [vmem:[%s3 + $0x2d0] sm:$0xff]
  %v219 = vld [vmem:[%s3 + $0x2d8] sm:$0xff]
  %v220 = vld [vmem:[%s3 + $0x2e0] sm:$0xff]
  %v221 = vld [vmem:[%s3 + $0x2e8] sm:$0xff]
  %v222 = vld [vmem:[%s3 + $0x2f0] sm:$0xff]
  %v223 = vld [vmem:[%s3 + $0x2f8] sm:$0xff]
  %v224 = vld [vmem:[%s3 + $0x300] sm:$0xff]
  %v225 = vld [vmem:[%s3 + $0x308] sm:$0xff]
  %v226 = vld [vmem:[%s3 + $0x310] sm:$0xff]
  %v227 = vld [vmem:[%s3 + $0x318] sm:$0xff]
  %v228 = vld [vmem:[%s3 + $0x320] sm:$0xff]
  %v229 = vld [vmem:[%s3 + $0x328] sm:$0xff]
  %v230 = vld [vmem:[%s3 + $0x330] sm:$0xff]
  %v231 = vld [vmem:[%s3 + $0x338] sm:$0xff]
  %v232 = vld [vmem:[%s3 + $0x340] sm:$0xff]
  %v233 = vld [vmem:[%s3 + $0x348] sm:$0xff]
  %v234 = vld [vmem:[%s3 + $0x350] sm:$0xff]
  %v235 = vld [vmem:[%s3 + $0x358] sm:$0xff]
  %v236 = vld [vmem:[%s3 + $0x360] sm:$0xff]
  %v237 = vld [vmem:[%s3 + $0x368] sm:$0xff]
  %v238 = vld [vmem:[%s3 + $0x370] sm:$0xff]
  %v239 = vld [vmem:[%s3 + $0x378] sm:$0xff]
  %v240 = vld [vmem:[%s3 + $0x380] sm:$0xff]
  %v241 = vld [vmem:[%s3 + $0x388] sm:$0xff]
  %v242 = vld [vmem:[%s3 + $0x390] sm:$0xff]
  %v243 = vld [vmem:[%s3 + $0x398] sm:$0xff]
  %v244 = vld [vmem:[%s3 + $0x3a0] sm:$0xff]
  %v245 = vld [vmem:[%s3 + $0x3a8] sm:$0xff]
  %v246 = vld [vmem:[%s3 + $0x3b0] sm:$0xff]
  %v247 = vld [vmem:[%s3 + $0x3b8] sm:$0xff]
  %v248 = vld [vmem:[%s3 + $0x3c0] sm:$0xff]
  %v249 = vld [vmem:[%s3 + $0x3c8] sm:$0xff]
  %v250 = vld [vmem:[%s3 + $0x3d0] sm:$0xff]
  %v251 = vld [vmem:[%s3 + $0x3d8] sm:$0xff]
  %v252 = vld [vmem:[%s3 + $0x3e0] sm:$0xff]
  %v253 = vld [vmem:[%s3 + $0x3e8] sm:$0xff]
  %v254 = vld [vmem:[%s3 + $0x3f0] sm:$0xff]
  %v255 = vld [vmem:[%s3 + $0x3f8] sm:$0xff]
  %v256 = vld [vmem:[%s3 + $0x400] sm:$0xff]
  %v257 = vld [vmem:[%s3 + $0x408] sm:$0xff]
  %v258 = vld [vmem:[%s3 + $0x410] sm:$0xff]
  %v259 = vld [vmem:[%s3 + $0x418] sm:$0xff]
  %v260 = vld [vmem:[%s3 + $0x420] sm:$0xff]
  %v261 = vld [vmem:[%s3 + $0x428] sm:$0xff]
  %v262 = vld [vmem:[%s3 + $0x430] sm:$0xff]
  %v263 = vld [vmem:[%s3 + $0x438] sm:$0xff]
  %v264 = vld [vmem:[%s3 + $0x440] sm:$0xff]
  %v265 = vld [vmem:[%s3 + $0x448] sm:$0xff]
  %v266 = vld [vmem:[%s3 + $0x450] sm:$0xff]
  %v267 = vld [vmem:[%s3 + $0x458] sm:$0xff]
  %v268 = vld [vmem:[%s3 + $0x460] sm:$0xff]
  %v269 = vld [vmem:[%s3 + $0x468] sm:$0xff]
  %v270 = vld [vmem:[%s3 + $0x470] sm:$0xff]
  %v271 = vld [vmem:[%s3 + $0x478] sm:$0xff]
  %v272 = vld [vmem:[%s3 + $0x480] sm:$0xff]
  %v273 = vld [vmem:[%s3 + $0x488] sm:$0xff]
  %v274 = vld [vmem:[%s3 + $0x490] sm:$0xff]
  %v275 = vld [vmem:[%s3 + $0x498] sm:$0xff]
  %v276 = vld [vmem:[%s3 + $0x4a0] sm:$0xff]
  %v277 = vld [vmem:[%s3 + $0x4a8] sm:$0xff]
  %v278 = vld [vmem:[%s3 + $0x4b0] sm:$0xff]
  %v279 = vld [vmem:[%s3 + $0x4b8] sm:$0xff]
  %v280 = vld [vmem:[%s3 + $0x4c0] sm:$0xff]
  %v281 = vld [vmem:[%s3 + $0x4c8] sm:$0xff]
  %v282 = vld [vmem:[%s3 + $0x4d0] sm:$0xff]
  %v283 = vld [vmem:[%s3 + $0x4d8] sm:$0xff]
  %v284 = vld [vmem:[%s3 + $0x4e0] sm:$0xff]
  %v285 = vld [vmem:[%s3 + $0x4e8] sm:$0xff]
  %v286 = vld [vmem:[%s3 + $0x4f0] sm:$0xff]
  %v287 = vld [vmem:[%s3 + $0x4f8] sm:$0xff]
  %v288 = vld [vmem:[%s3 + $0x500] sm:$0xff]
  %v289 = vld [vmem:[%s3 + $0x508] sm:$0xff]
  %v290 = vld [vmem:[%s3 + $0x510] sm:$0xff]
  %v291 = vld [vmem:[%s3 + $0x518] sm:$0xff]
  %v292 = vld [vmem:[%s3 + $0x520] sm:$0xff]
  %v293 = vld [vmem:[%s3 + $0x528] sm:$0xff]
  %v294 = vld [vmem:[%s3 + $0x530] sm:$0xff]
  %v295 = vld [vmem:[%s3 + $0x538] sm:$0xff]
  %v296 = vld [vmem:[%s3 + $0x540] sm:$0xff]
  %v297 = vld [vmem:[%s3 + $0x548] sm:$0xff]
  %v298 = vld [vmem:[%s3 + $0x550] sm:$0xff]
  %v299 = vld [vmem:[%s3 + $0x558] sm:$0xff]
  %v300 = vld [vmem:[%s3 + $0x560] sm:$0xff]
  %v301 = vld [vmem:[%s3 + $0x568] sm:$0xff]
  %v302 = vld [vmem:[%s3 + $0x570] sm:$0xff]
  %v303 = vld [vmem:[%s3 + $0x578] sm:$0xff]
  %v304 = vld [vmem:[%s3 + $0x580] sm:$0xff]
  %v305 = vld [vmem:[%s3 + $0x588] sm:$0xff]
  %v306 = vld [vmem:[%s3 + $0x590] sm:$0xff]
  %v307 = vld [vmem:[%s3 + $0x598] sm:$0xff]
  %v308 = vld [vmem:[%s3 + $0x5a0] sm:$0xff]
  %v309 = vld [vmem:[%s3 + $0x5a8] sm:$0xff]
  %v310 = vld [vmem:[%s3 + $0x5b0] sm:$0xff]
  %v311 = vld [vmem:[%s3 + $0x5b8] sm:$0xff]
  %v312 = vld [vmem:[%s3 + $0x5c0] sm:$0xff]
  %v313 = vld [vmem:[%s3 + $0x5c8] sm:$0xff]
  %v314 = vld [vmem:[%s3 + $0x5d0] sm:$0xff]
  %v315 = vld [vmem:[%s3 + $0x5d8] sm:$0xff]
  %v316 = vld [vmem:[%s3 + $0x5e0] sm:$0xff]
  %v317 = vld [vmem:[%s3 + $0x5e8] sm:$0xff]
  %v318 = vld [vmem:[%s3 + $0x5f0] sm:$0xff]
  %v319 = vld [vmem:[%s3 + $0x5f8] sm:$0xff]
  %v320 = vld [vmem:[%s3 + $0x600] sm:$0xff]
  %v321 = vld [vmem:[%s3 + $0x608] sm:$0xff]
  %v322 = vld [vmem:[%s3 + $0x610] sm:$0xff]
  %v323 = vld [vmem:[%s3 + $0x618] sm:$0xff]
  %v324 = vld [vmem:[%s3 + $0x620] sm:$0xff]
  %v325 = vld [vmem:[%s3 + $0x628] sm:$0xff]
  %v326 = vld [vmem:[%s3 + $0x630] sm:$0xff]
  %v327 = vld [vmem:[%s3 + $0x638] sm:$0xff]
  %v328 = vld [vmem:[%s3 + $0x640] sm:$0xff]
  %v329 = vld [vmem:[%s3 + $0x648] sm:$0xff]
  %v330 = vld [vmem:[%s3 + $0x650] sm:$0xff]
  %v331 = vld [vmem:[%s3 + $0x658] sm:$0xff]
  %v332 = vld [vmem:[%s3 + $0x660] sm:$0xff]
  %v333 = vld [vmem:[%s3 + $0x668] sm:$0xff]
  %v334 = vld [vmem:[%s3 + $0x670] sm:$0xff]
  %v335 = vld [vmem:[%s3 + $0x678] sm:$0xff]
  %v336 = vld [vmem:[%s3 + $0x680] sm:$0xff]
  %v337 = vld [vmem:[%s3 + $0x688] sm:$0xff]
  %v338 = vld [vmem:[%s3 + $0x690] sm:$0xff]
  %v339 = vld [vmem:[%s3 + $0x698] sm:$0xff]
  %v340 = vld [vmem:[%s3 + $0x6a0] sm:$0xff]
  %v341 = vld [vmem:[%s3 + $0x6a8] sm:$0xff]
  %v342 = vld [vmem:[%s3 + $0x6b0] sm:$0xff]
  %v343 = vld [vmem:[%s3 + $0x6b8] sm:$0xff]
  %v344 = vld [vmem:[%s3 + $0x6c0] sm:$0xff]
  %v345 = vld [vmem:[%s3 + $0x6c8] sm:$0xff]
  %v346 = vld [vmem:[%s3 + $0x6d0] sm:$0xff]
  %v347 = vld [vmem:[%s3 + $0x6d8] sm:$0xff]
  %v348 = vld [vmem:[%s3 + $0x6e0] sm:$0xff]
  %v349 = vld [vmem:[%s3 + $0x6e8] sm:$0xff]
  %v350 = vld [vmem:[%s3 + $0x6f0] sm:$0xff]
  %v351 = vld [vmem:[%s3 + $0x6f8] sm:$0xff]
  %v352 = vld [vmem:[%s3 + $0x700] sm:$0xff]
  %v353 = vld [vmem:[%s3 + $0x708] sm:$0xff]
  %v354 = vld [vmem:[%s3 + $0x710] sm:$0xff]
  %v355 = vld [vmem:[%s3 + $0x718] sm:$0xff]
  %v356 = vld [vmem:[%s3 + $0x720] sm:$0xff]
  %v357 = vld [vmem:[%s3 + $0x728] sm:$0xff]
  %v358 = vld [vmem:[%s3 + $0x730] sm:$0xff]
  %v359 = vld [vmem:[%s3 + $0x738] sm:$0xff]
  %v360 = vld [vmem:[%s3 + $0x740] sm:$0xff]
  %v361 = vld [vmem:[%s3 + $0x748] sm:$0xff]
  %v362 = vld [vmem:[%s3 + $0x750] sm:$0xff]
  %v363 = vld [vmem:[%s3 + $0x758] sm:$0xff]
  %v364 = vld [vmem:[%s3 + $0x760] sm:$0xff]
  %v365 = vld [vmem:[%s3 + $0x768] sm:$0xff]
  %v366 = vld [vmem:[%s3 + $0x770] sm:$0xff]
  %v367 = vld [vmem:[%s3 + $0x778] sm:$0xff]
  %v368 = vld [vmem:[%s3 + $0x780] sm:$0xff]
  %v369 = vld [vmem:[%s3 + $0x788] sm:$0xff]
  %v370 = vld [vmem:[%s3 + $0x790] sm:$0xff]
  %v371 = vld [vmem:[%s3 + $0x798] sm:$0xff]
  %v372 = vld [vmem:[%s3 + $0x7a0] sm:$0xff]
  %v373 = vld [vmem:[%s3 + $0x7a8] sm:$0xff]
  %v374 = vld [vmem:[%s3 + $0x7b0] sm:$0xff]
  %v375 = vld [vmem:[%s3 + $0x7b8] sm:$0xff]
  %v376 = vld [vmem:[%s3 + $0x7c0] sm:$0xff]
  %v377 = vld [vmem:[%s3 + $0x7c8] sm:$0xff]
  %v378 = vld [vmem:[%s3 + $0x7d0] sm:$0xff]
  %v379 = vld [vmem:[%s3 + $0x7d8] sm:$0xff]
  %v380 = vld [vmem:[%s3 + $0x7e0] sm:$0xff]
  %v381 = vld [vmem:[%s3 + $0x7e8] sm:$0xff]
  %v382 = vld [vmem:[%s3 + $0x7f0] sm:$0xff]
  %v383 = vld [vmem:[%s3 + $0x7f8] sm:$0xff]
  %v384 = vld [vmem:[%s4] sm:$0xff]
  %v385 = vld [vmem:[%s4 + $0x8] sm:$0xff]
  %v388 = vlaneseq
  %v389 = vshrl.u32 %v388, 7
  %v390 = vsub.s32 0, %v389
  %v391 = vrot.slane %v384, %v390
  %v392 = vlaneseq
  %v393 = vshrl.u32 %v392, 7
  %v394 = vsub.s32 1, %v393
  %v395 = vrot.slane %v384, %v394
  %v396 = vlaneseq
  %v397 = vshrl.u32 %v396, 7
  %v398 = vsub.s32 2, %v397
  %v399 = vrot.slane %v384, %v398
  %v400 = vlaneseq
  %v401 = vshrl.u32 %v400, 7
  %v402 = vsub.s32 3, %v401
  %v403 = vrot.slane %v384, %v402
  %v404 = vlaneseq
  %v405 = vshrl.u32 %v404, 7
  %v406 = vsub.s32 4, %v405
  %v407 = vrot.slane %v384, %v406
  %v408 = vlaneseq
  %v409 = vshrl.u32 %v408, 7
  %v410 = vsub.s32 5, %v409
  %v411 = vrot.slane %v384, %v410
  %v412 = vlaneseq
  %v413 = vshrl.u32 %v412, 7
  %v414 = vsub.s32 6, %v413
  %v415 = vrot.slane %v384, %v414
  %v416 = vlaneseq
  %v417 = vshrl.u32 %v416, 7
  %v418 = vsub.s32 7, %v417
  %v419 = vrot.slane %v384, %v418
  %v420 = vlaneseq
  %v421 = vshrl.u32 %v420, 7
  %v422 = vsub.s32 0, %v421
  %v423 = vrot.slane %v385, %v422
  %v424 = vlaneseq
  %v425 = vshrl.u32 %v424, 7
  %v426 = vsub.s32 1, %v425
  %v427 = vrot.slane %v385, %v426
  %v428 = vlaneseq
  %v429 = vshrl.u32 %v428, 7
  %v430 = vsub.s32 2, %v429
  %v431 = vrot.slane %v385, %v430
  %v432 = vlaneseq
  %v433 = vshrl.u32 %v432, 7
  %v434 = vsub.s32 3, %v433
  %v435 = vrot.slane %v385, %v434
  %v436 = vlaneseq
  %v437 = vshrl.u32 %v436, 7
  %v438 = vsub.s32 4, %v437
  %v439 = vrot.slane %v385, %v438
  %v440 = vlaneseq
  %v441 = vshrl.u32 %v440, 7
  %v442 = vsub.s32 5, %v441
  %v443 = vrot.slane %v385, %v442
  %v444 = vlaneseq
  %v445 = vshrl.u32 %v444, 7
  %v446 = vsub.s32 6, %v445
  %v447 = vrot.slane %v385, %v446
  %v448 = vlaneseq
  %v449 = vshrl.u32 %v448, 7
  %v450 = vsub.s32 7, %v449
  %v451 = vrot.slane %v385, %v450
  %v724 = vunpack.c.l.b16 %v128
  %v725 = vunpack.c.h.b16 %v128
  %v726 = vunpack.c.l.b16 %v129
  %v727 = vunpack.c.h.b16 %v129
  %v728 = vunpack.c.l.b16 %v130
  %v729 = vunpack.c.h.b16 %v130
  %v730 = vunpack.c.l.b16 %v131
  %v731 = vunpack.c.h.b16 %v131
  %v732 = vunpack.c.l.b16 %v132
  %v733 = vunpack.c.h.b16 %v132
  %v734 = vunpack.c.l.b16 %v133
  %v735 = vunpack.c.h.b16 %v133
  %v736 = vunpack.c.l.b16 %v134
  %v737 = vunpack.c.h.b16 %v134
  %v738 = vunpack.c.l.b16 %v135
  %v739 = vunpack.c.h.b16 %v135
  %v740 = vunpack.c.l.b16 %v136
  %v741 = vunpack.c.h.b16 %v136
  %v742 = vunpack.c.l.b16 %v137
  %v743 = vunpack.c.h.b16 %v137
  %v744 = vunpack.c.l.b16 %v138
  %v745 = vunpack.c.h.b16 %v138
  %v746 = vunpack.c.l.b16 %v139
  %v747 = vunpack.c.h.b16 %v139
  %v748 = vunpack.c.l.b16 %v140
  %v749 = vunpack.c.h.b16 %v140
  %v750 = vunpack.c.l.b16 %v141
  %v751 = vunpack.c.h.b16 %v141
  %v752 = vunpack.c.l.b16 %v142
  %v753 = vunpack.c.h.b16 %v142
  %v754 = vunpack.c.l.b16 %v143
  %v755 = vunpack.c.h.b16 %v143
  %v756 = vunpack.c.l.b16 %v144
  %v757 = vunpack.c.h.b16 %v144
  %v758 = vunpack.c.l.b16 %v145
  %v759 = vunpack.c.h.b16 %v145
  %v760 = vunpack.c.l.b16 %v146
  %v761 = vunpack.c.h.b16 %v146
  %v762 = vunpack.c.l.b16 %v147
  %v763 = vunpack.c.h.b16 %v147
  %v764 = vunpack.c.l.b16 %v148
  %v765 = vunpack.c.h.b16 %v148
  %v766 = vunpack.c.l.b16 %v149
  %v767 = vunpack.c.h.b16 %v149
  %v768 = vunpack.c.l.b16 %v150
  %v769 = vunpack.c.h.b16 %v150
  %v770 = vunpack.c.l.b16 %v151
  %v771 = vunpack.c.h.b16 %v151
  %v772 = vunpack.c.l.b16 %v152
  %v773 = vunpack.c.h.b16 %v152
  %v774 = vunpack.c.l.b16 %v153
  %v775 = vunpack.c.h.b16 %v153
  %v776 = vunpack.c.l.b16 %v154
  %v777 = vunpack.c.h.b16 %v154
  %v778 = vunpack.c.l.b16 %v155
  %v779 = vunpack.c.h.b16 %v155
  %v780 = vunpack.c.l.b16 %v156
  %v781 = vunpack.c.h.b16 %v156
  %v782 = vunpack.c.l.b16 %v157
  %v783 = vunpack.c.h.b16 %v157
  %v784 = vunpack.c.l.b16 %v158
  %v785 = vunpack.c.h.b16 %v158
  %v786 = vunpack.c.l.b16 %v159
  %v787 = vunpack.c.h.b16 %v159
  %v788 = vunpack.c.l.b16 %v160
  %v789 = vunpack.c.h.b16 %v160
  %v790 = vunpack.c.l.b16 %v161
  %v791 = vunpack.c.h.b16 %v161
  %v792 = vunpack.c.l.b16 %v162
  %v793 = vunpack.c.h.b16 %v162
  %v794 = vunpack.c.l.b16 %v163
  %v795 = vunpack.c.h.b16 %v163
  %v796 = vunpack.c.l.b16 %v164
  %v797 = vunpack.c.h.b16 %v164
  %v798 = vunpack.c.l.b16 %v165
  %v799 = vunpack.c.h.b16 %v165
  %v800 = vunpack.c.l.b16 %v166
  %v801 = vunpack.c.h.b16 %v166
  %v802 = vunpack.c.l.b16 %v167
  %v803 = vunpack.c.h.b16 %v167
  %v804 = vunpack.c.l.b16 %v168
  %v805 = vunpack.c.h.b16 %v168
  %v806 = vunpack.c.l.b16 %v169
  %v807 = vunpack.c.h.b16 %v169
  %v808 = vunpack.c.l.b16 %v170
  %v809 = vunpack.c.h.b16 %v170
  %v810 = vunpack.c.l.b16 %v171
  %v811 = vunpack.c.h.b16 %v171
  %v812 = vunpack.c.l.b16 %v172
  %v813 = vunpack.c.h.b16 %v172
  %v814 = vunpack.c.l.b16 %v173
  %v815 = vunpack.c.h.b16 %v173
  %v816 = vunpack.c.l.b16 %v174
  %v817 = vunpack.c.h.b16 %v174
  %v818 = vunpack.c.l.b16 %v175
  %v819 = vunpack.c.h.b16 %v175
  %v820 = vunpack.c.l.b16 %v176
  %v821 = vunpack.c.h.b16 %v176
  %v822 = vunpack.c.l.b16 %v177
  %v823 = vunpack.c.h.b16 %v177
  %v824 = vunpack.c.l.b16 %v178
  %v825 = vunpack.c.h.b16 %v178
  %v826 = vunpack.c.l.b16 %v179
  %v827 = vunpack.c.h.b16 %v179
  %v828 = vunpack.c.l.b16 %v180
  %v829 = vunpack.c.h.b16 %v180
  %v830 = vunpack.c.l.b16 %v181
  %v831 = vunpack.c.h.b16 %v181
  %v832 = vunpack.c.l.b16 %v182
  %v833 = vunpack.c.h.b16 %v182
  %v834 = vunpack.c.l.b16 %v183
  %v835 = vunpack.c.h.b16 %v183
  %v836 = vunpack.c.l.b16 %v184
  %v837 = vunpack.c.h.b16 %v184
  %v838 = vunpack.c.l.b16 %v185
  %v839 = vunpack.c.h.b16 %v185
  %v840 = vunpack.c.l.b16 %v186
  %v841 = vunpack.c.h.b16 %v186
  %v842 = vunpack.c.l.b16 %v187
  %v843 = vunpack.c.h.b16 %v187
  %v844 = vunpack.c.l.b16 %v188
  %v845 = vunpack.c.h.b16 %v188
  %v846 = vunpack.c.l.b16 %v189
  %v847 = vunpack.c.h.b16 %v189
  %v848 = vunpack.c.l.b16 %v190
  %v849 = vunpack.c.h.b16 %v190
  %v850 = vunpack.c.l.b16 %v191
  %v851 = vunpack.c.h.b16 %v191
  %v852 = vunpack.c.l.b16 %v192
  %v853 = vunpack.c.h.b16 %v192
  %v854 = vunpack.c.l.b16 %v193
  %v855 = vunpack.c.h.b16 %v193
  %v856 = vunpack.c.l.b16 %v194
  %v857 = vunpack.c.h.b16 %v194
  %v858 = vunpack.c.l.b16 %v195
  %v859 = vunpack.c.h.b16 %v195
  %v860 = vunpack.c.l.b16 %v196
  %v861 = vunpack.c.h.b16 %v196
  %v862 = vunpack.c.l.b16 %v197
  %v863 = vunpack.c.h.b16 %v197
  %v864 = vunpack.c.l.b16 %v198
  %v865 = vunpack.c.h.b16 %v198
  %v866 = vunpack.c.l.b16 %v199
  %v867 = vunpack.c.h.b16 %v199
  %v868 = vunpack.c.l.b16 %v200
  %v869 = vunpack.c.h.b16 %v200
  %v870 = vunpack.c.l.b16 %v201
  %v871 = vunpack.c.h.b16 %v201
  %v872 = vunpack.c.l.b16 %v202
  %v873 = vunpack.c.h.b16 %v202
  %v874 = vunpack.c.l.b16 %v203
  %v875 = vunpack.c.h.b16 %v203
  %v876 = vunpack.c.l.b16 %v204
  %v877 = vunpack.c.h.b16 %v204
  %v878 = vunpack.c.l.b16 %v205
  %v879 = vunpack.c.h.b16 %v205
  %v880 = vunpack.c.l.b16 %v206
  %v881 = vunpack.c.h.b16 %v206
  %v882 = vunpack.c.l.b16 %v207
  %v883 = vunpack.c.h.b16 %v207
  %v884 = vunpack.c.l.b16 %v208
  %v885 = vunpack.c.h.b16 %v208
  %v886 = vunpack.c.l.b16 %v209
  %v887 = vunpack.c.h.b16 %v209
  %v888 = vunpack.c.l.b16 %v210
  %v889 = vunpack.c.h.b16 %v210
  %v890 = vunpack.c.l.b16 %v211
  %v891 = vunpack.c.h.b16 %v211
  %v892 = vunpack.c.l.b16 %v212
  %v893 = vunpack.c.h.b16 %v212
  %v894 = vunpack.c.l.b16 %v213
  %v895 = vunpack.c.h.b16 %v213
  %v896 = vunpack.c.l.b16 %v214
  %v897 = vunpack.c.h.b16 %v214
  %v898 = vunpack.c.l.b16 %v215
  %v899 = vunpack.c.h.b16 %v215
  %v900 = vunpack.c.l.b16 %v216
  %v901 = vunpack.c.h.b16 %v216
  %v902 = vunpack.c.l.b16 %v217
  %v903 = vunpack.c.h.b16 %v217
  %v904 = vunpack.c.l.b16 %v218
  %v905 = vunpack.c.h.b16 %v218
  %v906 = vunpack.c.l.b16 %v219
  %v907 = vunpack.c.h.b16 %v219
  %v908 = vunpack.c.l.b16 %v220
  %v909 = vunpack.c.h.b16 %v220
  %v910 = vunpack.c.l.b16 %v221
  %v911 = vunpack.c.h.b16 %v221
  %v912 = vunpack.c.l.b16 %v222
  %v913 = vunpack.c.h.b16 %v222
  %v914 = vunpack.c.l.b16 %v223
  %v915 = vunpack.c.h.b16 %v223
  %v916 = vunpack.c.l.b16 %v224
  %v917 = vunpack.c.h.b16 %v224
  %v918 = vunpack.c.l.b16 %v225
  %v919 = vunpack.c.h.b16 %v225
  %v920 = vunpack.c.l.b16 %v226
  %v921 = vunpack.c.h.b16 %v226
  %v922 = vunpack.c.l.b16 %v227
  %v923 = vunpack.c.h.b16 %v227
  %v924 = vunpack.c.l.b16 %v228
  %v925 = vunpack.c.h.b16 %v228
  %v926 = vunpack.c.l.b16 %v229
  %v927 = vunpack.c.h.b16 %v229
  %v928 = vunpack.c.l.b16 %v230
  %v929 = vunpack.c.h.b16 %v230
  %v930 = vunpack.c.l.b16 %v231
  %v931 = vunpack.c.h.b16 %v231
  %v932 = vunpack.c.l.b16 %v232
  %v933 = vunpack.c.h.b16 %v232
  %v934 = vunpack.c.l.b16 %v233
  %v935 = vunpack.c.h.b16 %v233
  %v936 = vunpack.c.l.b16 %v234
  %v937 = vunpack.c.h.b16 %v234
  %v938 = vunpack.c.l.b16 %v235
  %v939 = vunpack.c.h.b16 %v235
  %v940 = vunpack.c.l.b16 %v236
  %v941 = vunpack.c.h.b16 %v236
  %v942 = vunpack.c.l.b16 %v237
  %v943 = vunpack.c.h.b16 %v237
  %v944 = vunpack.c.l.b16 %v238
  %v945 = vunpack.c.h.b16 %v238
  %v946 = vunpack.c.l.b16 %v239
  %v947 = vunpack.c.h.b16 %v239
  %v948 = vunpack.c.l.b16 %v240
  %v949 = vunpack.c.h.b16 %v240
  %v950 = vunpack.c.l.b16 %v241
  %v951 = vunpack.c.h.b16 %v241
  %v952 = vunpack.c.l.b16 %v242
  %v953 = vunpack.c.h.b16 %v242
  %v954 = vunpack.c.l.b16 %v243
  %v955 = vunpack.c.h.b16 %v243
  %v956 = vunpack.c.l.b16 %v244
  %v957 = vunpack.c.h.b16 %v244
  %v958 = vunpack.c.l.b16 %v245
  %v959 = vunpack.c.h.b16 %v245
  %v960 = vunpack.c.l.b16 %v246
  %v961 = vunpack.c.h.b16 %v246
  %v962 = vunpack.c.l.b16 %v247
  %v963 = vunpack.c.h.b16 %v247
  %v964 = vunpack.c.l.b16 %v248
  %v965 = vunpack.c.h.b16 %v248
  %v966 = vunpack.c.l.b16 %v249
  %v967 = vunpack.c.h.b16 %v249
  %v968 = vunpack.c.l.b16 %v250
  %v969 = vunpack.c.h.b16 %v250
  %v970 = vunpack.c.l.b16 %v251
  %v971 = vunpack.c.h.b16 %v251
  %v972 = vunpack.c.l.b16 %v252
  %v973 = vunpack.c.h.b16 %v252
  %v974 = vunpack.c.l.b16 %v253
  %v975 = vunpack.c.h.b16 %v253
  %v976 = vunpack.c.l.b16 %v254
  %v977 = vunpack.c.h.b16 %v254
  %v978 = vunpack.c.l.b16 %v255
  %v979 = vunpack.c.h.b16 %v255
  %v980 = vunpack.c.l.b16 %v256
  %v981 = vunpack.c.h.b16 %v256
  %v982 = vunpack.c.l.b16 %v257
  %v983 = vunpack.c.h.b16 %v257
  %v984 = vunpack.c.l.b16 %v258
  %v985 = vunpack.c.h.b16 %v258
  %v986 = vunpack.c.l.b16 %v259
  %v987 = vunpack.c.h.b16 %v259
  %v988 = vunpack.c.l.b16 %v260
  %v989 = vunpack.c.h.b16 %v260
  %v990 = vunpack.c.l.b16 %v261
  %v991 = vunpack.c.h.b16 %v261
  %v992 = vunpack.c.l.b16 %v262
  %v993 = vunpack.c.h.b16 %v262
  %v994 = vunpack.c.l.b16 %v263
  %v995 = vunpack.c.h.b16 %v263
  %v996 = vunpack.c.l.b16 %v264
  %v997 = vunpack.c.h.b16 %v264
  %v998 = vunpack.c.l.b16 %v265
  %v999 = vunpack.c.h.b16 %v265
  %v1000 = vunpack.c.l.b16 %v266
  %v1001 = vunpack.c.h.b16 %v266
  %v1002 = vunpack.c.l.b16 %v267
  %v1003 = vunpack.c.h.b16 %v267
  %v1004 = vunpack.c.l.b16 %v268
  %v1005 = vunpack.c.h.b16 %v268
  %v1006 = vunpack.c.l.b16 %v269
  %v1007 = vunpack.c.h.b16 %v269
  %v1008 = vunpack.c.l.b16 %v270
  %v1009 = vunpack.c.h.b16 %v270
  %v1010 = vunpack.c.l.b16 %v271
  %v1011 = vunpack.c.h.b16 %v271
  %v1012 = vunpack.c.l.b16 %v272
  %v1013 = vunpack.c.h.b16 %v272
  %v1014 = vunpack.c.l.b16 %v273
  %v1015 = vunpack.c.h.b16 %v273
  %v1016 = vunpack.c.l.b16 %v274
  %v1017 = vunpack.c.h.b16 %v274
  %v1018 = vunpack.c.l.b16 %v275
  %v1019 = vunpack.c.h.b16 %v275
  %v1020 = vunpack.c.l.b16 %v276
  %v1021 = vunpack.c.h.b16 %v276
  %v1022 = vunpack.c.l.b16 %v277
  %v1023 = vunpack.c.h.b16 %v277
  %v1024 = vunpack.c.l.b16 %v278
  %v1025 = vunpack.c.h.b16 %v278
  %v1026 = vunpack.c.l.b16 %v279
  %v1027 = vunpack.c.h.b16 %v279
  %v1028 = vunpack.c.l.b16 %v280
  %v1029 = vunpack.c.h.b16 %v280
  %v1030 = vunpack.c.l.b16 %v281
  %v1031 = vunpack.c.h.b16 %v281
  %v1032 = vunpack.c.l.b16 %v282
  %v1033 = vunpack.c.h.b16 %v282
  %v1034 = vunpack.c.l.b16 %v283
  %v1035 = vunpack.c.h.b16 %v283
  %v1036 = vunpack.c.l.b16 %v284
  %v1037 = vunpack.c.h.b16 %v284
  %v1038 = vunpack.c.l.b16 %v285
  %v1039 = vunpack.c.h.b16 %v285
  %v1040 = vunpack.c.l.b16 %v286
  %v1041 = vunpack.c.h.b16 %v286
  %v1042 = vunpack.c.l.b16 %v287
  %v1043 = vunpack.c.h.b16 %v287
  %v1044 = vunpack.c.l.b16 %v288
  %v1045 = vunpack.c.h.b16 %v288
  %v1046 = vunpack.c.l.b16 %v289
  %v1047 = vunpack.c.h.b16 %v289
  %v1048 = vunpack.c.l.b16 %v290
  %v1049 = vunpack.c.h.b16 %v290
  %v1050 = vunpack.c.l.b16 %v291
  %v1051 = vunpack.c.h.b16 %v291
  %v1052 = vunpack.c.l.b16 %v292
  %v1053 = vunpack.c.h.b16 %v292
  %v1054 = vunpack.c.l.b16 %v293
  %v1055 = vunpack.c.h.b16 %v293
  %v1056 = vunpack.c.l.b16 %v294
  %v1057 = vunpack.c.h.b16 %v294
  %v1058 = vunpack.c.l.b16 %v295
  %v1059 = vunpack.c.h.b16 %v295
  %v1060 = vunpack.c.l.b16 %v296
  %v1061 = vunpack.c.h.b16 %v296
  %v1062 = vunpack.c.l.b16 %v297
  %v1063 = vunpack.c.h.b16 %v297
  %v1064 = vunpack.c.l.b16 %v298
  %v1065 = vunpack.c.h.b16 %v298
  %v1066 = vunpack.c.l.b16 %v299
  %v1067 = vunpack.c.h.b16 %v299
  %v1068 = vunpack.c.l.b16 %v300
  %v1069 = vunpack.c.h.b16 %v300
  %v1070 = vunpack.c.l.b16 %v301
  %v1071 = vunpack.c.h.b16 %v301
  %v1072 = vunpack.c.l.b16 %v302
  %v1073 = vunpack.c.h.b16 %v302
  %v1074 = vunpack.c.l.b16 %v303
  %v1075 = vunpack.c.h.b16 %v303
  %v1076 = vunpack.c.l.b16 %v304
  %v1077 = vunpack.c.h.b16 %v304
  %v1078 = vunpack.c.l.b16 %v305
  %v1079 = vunpack.c.h.b16 %v305
  %v1080 = vunpack.c.l.b16 %v306
  %v1081 = vunpack.c.h.b16 %v306
  %v1082 = vunpack.c.l.b16 %v307
  %v1083 = vunpack.c.h.b16 %v307
  %v1084 = vunpack.c.l.b16 %v308
  %v1085 = vunpack.c.h.b16 %v308
  %v1086 = vunpack.c.l.b16 %v309
  %v1087 = vunpack.c.h.b16 %v309
  %v1088 = vunpack.c.l.b16 %v310
  %v1089 = vunpack.c.h.b16 %v310
  %v1090 = vunpack.c.l.b16 %v311
  %v1091 = vunpack.c.h.b16 %v311
  %v1092 = vunpack.c.l.b16 %v312
  %v1093 = vunpack.c.h.b16 %v312
  %v1094 = vunpack.c.l.b16 %v313
  %v1095 = vunpack.c.h.b16 %v313
  %v1096 = vunpack.c.l.b16 %v314
  %v1097 = vunpack.c.h.b16 %v314
  %v1098 = vunpack.c.l.b16 %v315
  %v1099 = vunpack.c.h.b16 %v315
  %v1100 = vunpack.c.l.b16 %v316
  %v1101 = vunpack.c.h.b16 %v316
  %v1102 = vunpack.c.l.b16 %v317
  %v1103 = vunpack.c.h.b16 %v317
  %v1104 = vunpack.c.l.b16 %v318
  %v1105 = vunpack.c.h.b16 %v318
  %v1106 = vunpack.c.l.b16 %v319
  %v1107 = vunpack.c.h.b16 %v319
  %v1108 = vunpack.c.l.b16 %v320
  %v1109 = vunpack.c.h.b16 %v320
  %v1110 = vunpack.c.l.b16 %v321
  %v1111 = vunpack.c.h.b16 %v321
  %v1112 = vunpack.c.l.b16 %v322
  %v1113 = vunpack.c.h.b16 %v322
  %v1114 = vunpack.c.l.b16 %v323
  %v1115 = vunpack.c.h.b16 %v323
  %v1116 = vunpack.c.l.b16 %v324
  %v1117 = vunpack.c.h.b16 %v324
  %v1118 = vunpack.c.l.b16 %v325
  %v1119 = vunpack.c.h.b16 %v325
  %v1120 = vunpack.c.l.b16 %v326
  %v1121 = vunpack.c.h.b16 %v326
  %v1122 = vunpack.c.l.b16 %v327
  %v1123 = vunpack.c.h.b16 %v327
  %v1124 = vunpack.c.l.b16 %v328
  %v1125 = vunpack.c.h.b16 %v328
  %v1126 = vunpack.c.l.b16 %v329
  %v1127 = vunpack.c.h.b16 %v329
  %v1128 = vunpack.c.l.b16 %v330
  %v1129 = vunpack.c.h.b16 %v330
  %v1130 = vunpack.c.l.b16 %v331
  %v1131 = vunpack.c.h.b16 %v331
  %v1132 = vunpack.c.l.b16 %v332
  %v1133 = vunpack.c.h.b16 %v332
  %v1134 = vunpack.c.l.b16 %v333
  %v1135 = vunpack.c.h.b16 %v333
  %v1136 = vunpack.c.l.b16 %v334
  %v1137 = vunpack.c.h.b16 %v334
  %v1138 = vunpack.c.l.b16 %v335
  %v1139 = vunpack.c.h.b16 %v335
  %v1140 = vunpack.c.l.b16 %v336
  %v1141 = vunpack.c.h.b16 %v336
  %v1142 = vunpack.c.l.b16 %v337
  %v1143 = vunpack.c.h.b16 %v337
  %v1144 = vunpack.c.l.b16 %v338
  %v1145 = vunpack.c.h.b16 %v338
  %v1146 = vunpack.c.l.b16 %v339
  %v1147 = vunpack.c.h.b16 %v339
  %v1148 = vunpack.c.l.b16 %v340
  %v1149 = vunpack.c.h.b16 %v340
  %v1150 = vunpack.c.l.b16 %v341
  %v1151 = vunpack.c.h.b16 %v341
  %v1152 = vunpack.c.l.b16 %v342
  %v1153 = vunpack.c.h.b16 %v342
  %v1154 = vunpack.c.l.b16 %v343
  %v1155 = vunpack.c.h.b16 %v343
  %v1156 = vunpack.c.l.b16 %v344
  %v1157 = vunpack.c.h.b16 %v344
  %v1158 = vunpack.c.l.b16 %v345
  %v1159 = vunpack.c.h.b16 %v345
  %v1160 = vunpack.c.l.b16 %v346
  %v1161 = vunpack.c.h.b16 %v346
  %v1162 = vunpack.c.l.b16 %v347
  %v1163 = vunpack.c.h.b16 %v347
  %v1164 = vunpack.c.l.b16 %v348
  %v1165 = vunpack.c.h.b16 %v348
  %v1166 = vunpack.c.l.b16 %v349
  %v1167 = vunpack.c.h.b16 %v349
  %v1168 = vunpack.c.l.b16 %v350
  %v1169 = vunpack.c.h.b16 %v350
  %v1170 = vunpack.c.l.b16 %v351
  %v1171 = vunpack.c.h.b16 %v351
  %v1172 = vunpack.c.l.b16 %v352
  %v1173 = vunpack.c.h.b16 %v352
  %v1174 = vunpack.c.l.b16 %v353
  %v1175 = vunpack.c.h.b16 %v353
  %v1176 = vunpack.c.l.b16 %v354
  %v1177 = vunpack.c.h.b16 %v354
  %v1178 = vunpack.c.l.b16 %v355
  %v1179 = vunpack.c.h.b16 %v355
  %v1180 = vunpack.c.l.b16 %v356
  %v1181 = vunpack.c.h.b16 %v356
  %v1182 = vunpack.c.l.b16 %v357
  %v1183 = vunpack.c.h.b16 %v357
  %v1184 = vunpack.c.l.b16 %v358
  %v1185 = vunpack.c.h.b16 %v358
  %v1186 = vunpack.c.l.b16 %v359
  %v1187 = vunpack.c.h.b16 %v359
  %v1188 = vunpack.c.l.b16 %v360
  %v1189 = vunpack.c.h.b16 %v360
  %v1190 = vunpack.c.l.b16 %v361
  %v1191 = vunpack.c.h.b16 %v361
  %v1192 = vunpack.c.l.b16 %v362
  %v1193 = vunpack.c.h.b16 %v362
  %v1194 = vunpack.c.l.b16 %v363
  %v1195 = vunpack.c.h.b16 %v363
  %v1196 = vunpack.c.l.b16 %v364
  %v1197 = vunpack.c.h.b16 %v364
  %v1198 = vunpack.c.l.b16 %v365
  %v1199 = vunpack.c.h.b16 %v365
  %v1200 = vunpack.c.l.b16 %v366
  %v1201 = vunpack.c.h.b16 %v366
  %v1202 = vunpack.c.l.b16 %v367
  %v1203 = vunpack.c.h.b16 %v367
  %v1204 = vunpack.c.l.b16 %v368
  %v1205 = vunpack.c.h.b16 %v368
  %v1206 = vunpack.c.l.b16 %v369
  %v1207 = vunpack.c.h.b16 %v369
  %v1208 = vunpack.c.l.b16 %v370
  %v1209 = vunpack.c.h.b16 %v370
  %v1210 = vunpack.c.l.b16 %v371
  %v1211 = vunpack.c.h.b16 %v371
  %v1212 = vunpack.c.l.b16 %v372
  %v1213 = vunpack.c.h.b16 %v372
  %v1214 = vunpack.c.l.b16 %v373
  %v1215 = vunpack.c.h.b16 %v373
  %v1216 = vunpack.c.l.b16 %v374
  %v1217 = vunpack.c.h.b16 %v374
  %v1218 = vunpack.c.l.b16 %v375
  %v1219 = vunpack.c.h.b16 %v375
  %v1220 = vunpack.c.l.b16 %v376
  %v1221 = vunpack.c.h.b16 %v376
  %v1222 = vunpack.c.l.b16 %v377
  %v1223 = vunpack.c.h.b16 %v377
  %v1224 = vunpack.c.l.b16 %v378
  %v1225 = vunpack.c.h.b16 %v378
  %v1226 = vunpack.c.l.b16 %v379
  %v1227 = vunpack.c.h.b16 %v379
  %v1228 = vunpack.c.l.b16 %v380
  %v1229 = vunpack.c.h.b16 %v380
  %v1230 = vunpack.c.l.b16 %v381
  %v1231 = vunpack.c.h.b16 %v381
  %v1232 = vunpack.c.l.b16 %v382
  %v1233 = vunpack.c.h.b16 %v382
  %v1234 = vunpack.c.l.b16 %v383
  %v1235 = vunpack.c.h.b16 %v383
  %v1236 = vpack.c.b16 %v740, %v724
  %v1237 = vpack.c.b16 %v741, %v725
  %v1238 = vpack.c.b16 %v742, %v726
  %v1239 = vpack.c.b16 %v743, %v727
  %v1240 = vpack.c.b16 %v744, %v728
  %v1241 = vpack.c.b16 %v745, %v729
  %v1242 = vpack.c.b16 %v746, %v730
  %v1243 = vpack.c.b16 %v747, %v731
  %v1244 = vpack.c.b16 %v748, %v732
  %v1245 = vpack.c.b16 %v749, %v733
  %v1246 = vpack.c.b16 %v750, %v734
  %v1247 = vpack.c.b16 %v751, %v735
  %v1248 = vpack.c.b16 %v752, %v736
  %v1249 = vpack.c.b16 %v753, %v737
  %v1250 = vpack.c.b16 %v754, %v738
  %v1251 = vpack.c.b16 %v755, %v739
  %v1252 = vpack.c.b16 %v772, %v756
  %v1253 = vpack.c.b16 %v773, %v757
  %v1254 = vpack.c.b16 %v774, %v758
  %v1255 = vpack.c.b16 %v775, %v759
  %v1256 = vpack.c.b16 %v776, %v760
  %v1257 = vpack.c.b16 %v777, %v761
  %v1258 = vpack.c.b16 %v778, %v762
  %v1259 = vpack.c.b16 %v779, %v763
  %v1260 = vpack.c.b16 %v780, %v764
  %v1261 = vpack.c.b16 %v781, %v765
  %v1262 = vpack.c.b16 %v782, %v766
  %v1263 = vpack.c.b16 %v783, %v767
  %v1264 = vpack.c.b16 %v784, %v768
  %v1265 = vpack.c.b16 %v785, %v769
  %v1266 = vpack.c.b16 %v786, %v770
  %v1267 = vpack.c.b16 %v787, %v771
  %v1268 = vpack.c.b16 %v804, %v788
  %v1269 = vpack.c.b16 %v805, %v789
  %v1270 = vpack.c.b16 %v806, %v790
  %v1271 = vpack.c.b16 %v807, %v791
  %v1272 = vpack.c.b16 %v808, %v792
  %v1273 = vpack.c.b16 %v809, %v793
  %v1274 = vpack.c.b16 %v810, %v794
  %v1275 = vpack.c.b16 %v811, %v795
  %v1276 = vpack.c.b16 %v812, %v796
  %v1277 = vpack.c.b16 %v813, %v797
  %v1278 = vpack.c.b16 %v814, %v798
  %v1279 = vpack.c.b16 %v815, %v799
  %v1280 = vpack.c.b16 %v816, %v800
  %v1281 = vpack.c.b16 %v817, %v801
  %v1282 = vpack.c.b16 %v818, %v802
  %v1283 = vpack.c.b16 %v819, %v803
  %v1284 = vpack.c.b16 %v836, %v820
  %v1285 = vpack.c.b16 %v837, %v821
  %v1286 = vpack.c.b16 %v838, %v822
  %v1287 = vpack.c.b16 %v839, %v823
  %v1288 = vpack.c.b16 %v840, %v824
  %v1289 = vpack.c.b16 %v841, %v825
  %v1290 = vpack.c.b16 %v842, %v826
  %v1291 = vpack.c.b16 %v843, %v827
  %v1292 = vpack.c.b16 %v844, %v828
  %v1293 = vpack.c.b16 %v845, %v829
  %v1294 = vpack.c.b16 %v846, %v830
  %v1295 = vpack.c.b16 %v847, %v831
  %v1296 = vpack.c.b16 %v848, %v832
  %v1297 = vpack.c.b16 %v849, %v833
  %v1298 = vpack.c.b16 %v850, %v834
  %v1299 = vpack.c.b16 %v851, %v835
  %v1300 = vpack.c.b16 %v868, %v852
  %v1301 = vpack.c.b16 %v869, %v853
  %v1302 = vpack.c.b16 %v870, %v854
  %v1303 = vpack.c.b16 %v871, %v855
  %v1304 = vpack.c.b16 %v872, %v856
  %v1305 = vpack.c.b16 %v873, %v857
  %v1306 = vpack.c.b16 %v874, %v858
  %v1307 = vpack.c.b16 %v875, %v859
  %v1308 = vpack.c.b16 %v876, %v860
  %v1309 = vpack.c.b16 %v877, %v861
  %v1310 = vpack.c.b16 %v878, %v862
  %v1311 = vpack.c.b16 %v879, %v863
  %v1312 = vpack.c.b16 %v880, %v864
  %v1313 = vpack.c.b16 %v881, %v865
  %v1314 = vpack.c.b16 %v882, %v866
  %v1315 = vpack.c.b16 %v883, %v867
  %v1316 = vpack.c.b16 %v900, %v884
  %v1317 = vpack.c.b16 %v901, %v885
  %v1318 = vpack.c.b16 %v902, %v886
  %v1319 = vpack.c.b16 %v903, %v887
  %v1320 = vpack.c.b16 %v904, %v888
  %v1321 = vpack.c.b16 %v905, %v889
  %v1322 = vpack.c.b16 %v906, %v890
  %v1323 = vpack.c.b16 %v907, %v891
  %v1324 = vpack.c.b16 %v908, %v892
  %v1325 = vpack.c.b16 %v909, %v893
  %v1326 = vpack.c.b16 %v910, %v894
  %v1327 = vpack.c.b16 %v911, %v895
  %v1328 = vpack.c.b16 %v912, %v896
  %v1329 = vpack.c.b16 %v913, %v897
  %v1330 = vpack.c.b16 %v914, %v898
  %v1331 = vpack.c.b16 %v915, %v899
  %v1332 = vpack.c.b16 %v932, %v916
  %v1333 = vpack.c.b16 %v933, %v917
  %v1334 = vpack.c.b16 %v934, %v918
  %v1335 = vpack.c.b16 %v935, %v919
  %v1336 = vpack.c.b16 %v936, %v920
  %v1337 = vpack.c.b16 %v937, %v921
  %v1338 = vpack.c.b16 %v938, %v922
  %v1339 = vpack.c.b16 %v939, %v923
  %v1340 = vpack.c.b16 %v940, %v924
  %v1341 = vpack.c.b16 %v941, %v925
  %v1342 = vpack.c.b16 %v942, %v926
  %v1343 = vpack.c.b16 %v943, %v927
  %v1344 = vpack.c.b16 %v944, %v928
  %v1345 = vpack.c.b16 %v945, %v929
  %v1346 = vpack.c.b16 %v946, %v930
  %v1347 = vpack.c.b16 %v947, %v931
  %v1348 = vpack.c.b16 %v964, %v948
  %v1349 = vpack.c.b16 %v965, %v949
  %v1350 = vpack.c.b16 %v966, %v950
  %v1351 = vpack.c.b16 %v967, %v951
  %v1352 = vpack.c.b16 %v968, %v952
  %v1353 = vpack.c.b16 %v969, %v953
  %v1354 = vpack.c.b16 %v970, %v954
  %v1355 = vpack.c.b16 %v971, %v955
  %v1356 = vpack.c.b16 %v972, %v956
  %v1357 = vpack.c.b16 %v973, %v957
  %v1358 = vpack.c.b16 %v974, %v958
  %v1359 = vpack.c.b16 %v975, %v959
  %v1360 = vpack.c.b16 %v976, %v960
  %v1361 = vpack.c.b16 %v977, %v961
  %v1362 = vpack.c.b16 %v978, %v962
  %v1363 = vpack.c.b16 %v979, %v963
  %v1364 = vpack.c.b16 %v996, %v980
  %v1365 = vpack.c.b16 %v997, %v981
  %v1366 = vpack.c.b16 %v998, %v982
  %v1367 = vpack.c.b16 %v999, %v983
  %v1368 = vpack.c.b16 %v1000, %v984
  %v1369 = vpack.c.b16 %v1001, %v985
  %v1370 = vpack.c.b16 %v1002, %v986
  %v1371 = vpack.c.b16 %v1003, %v987
  %v1372 = vpack.c.b16 %v1004, %v988
  %v1373 = vpack.c.b16 %v1005, %v989
  %v1374 = vpack.c.b16 %v1006, %v990
  %v1375 = vpack.c.b16 %v1007, %v991
  %v1376 = vpack.c.b16 %v1008, %v992
  %v1377 = vpack.c.b16 %v1009, %v993
  %v1378 = vpack.c.b16 %v1010, %v994
  %v1379 = vpack.c.b16 %v1011, %v995
  %v1380 = vpack.c.b16 %v1028, %v1012
  %v1381 = vpack.c.b16 %v1029, %v1013
  %v1382 = vpack.c.b16 %v1030, %v1014
  %v1383 = vpack.c.b16 %v1031, %v1015
  %v1384 = vpack.c.b16 %v1032, %v1016
  %v1385 = vpack.c.b16 %v1033, %v1017
  %v1386 = vpack.c.b16 %v1034, %v1018
  %v1387 = vpack.c.b16 %v1035, %v1019
  %v1388 = vpack.c.b16 %v1036, %v1020
  %v1389 = vpack.c.b16 %v1037, %v1021
  %v1390 = vpack.c.b16 %v1038, %v1022
  %v1391 = vpack.c.b16 %v1039, %v1023
  %v1392 = vpack.c.b16 %v1040, %v1024
  %v1393 = vpack.c.b16 %v1041, %v1025
  %v1394 = vpack.c.b16 %v1042, %v1026
  %v1395 = vpack.c.b16 %v1043, %v1027
  %v1396 = vpack.c.b16 %v1060, %v1044
  %v1397 = vpack.c.b16 %v1061, %v1045
  %v1398 = vpack.c.b16 %v1062, %v1046
  %v1399 = vpack.c.b16 %v1063, %v1047
  %v1400 = vpack.c.b16 %v1064, %v1048
  %v1401 = vpack.c.b16 %v1065, %v1049
  %v1402 = vpack.c.b16 %v1066, %v1050
  %v1403 = vpack.c.b16 %v1067, %v1051
  %v1404 = vpack.c.b16 %v1068, %v1052
  %v1405 = vpack.c.b16 %v1069, %v1053
  %v1406 = vpack.c.b16 %v1070, %v1054
  %v1407 = vpack.c.b16 %v1071, %v1055
  %v1408 = vpack.c.b16 %v1072, %v1056
  %v1409 = vpack.c.b16 %v1073, %v1057
  %v1410 = vpack.c.b16 %v1074, %v1058
  %v1411 = vpack.c.b16 %v1075, %v1059
  %v1412 = vpack.c.b16 %v1092, %v1076
  %v1413 = vpack.c.b16 %v1093, %v1077
  %v1414 = vpack.c.b16 %v1094, %v1078
  %v1415 = vpack.c.b16 %v1095, %v1079
  %v1416 = vpack.c.b16 %v1096, %v1080
  %v1417 = vpack.c.b16 %v1097, %v1081
  %v1418 = vpack.c.b16 %v1098, %v1082
  %v1419 = vpack.c.b16 %v1099, %v1083
  %v1420 = vpack.c.b16 %v1100, %v1084
  %v1421 = vpack.c.b16 %v1101, %v1085
  %v1422 = vpack.c.b16 %v1102, %v1086
  %v1423 = vpack.c.b16 %v1103, %v1087
  %v1424 = vpack.c.b16 %v1104, %v1088
  %v1425 = vpack.c.b16 %v1105, %v1089
  %v1426 = vpack.c.b16 %v1106, %v1090
  %v1427 = vpack.c.b16 %v1107, %v1091
  %v1428 = vpack.c.b16 %v1124, %v1108
  %v1429 = vpack.c.b16 %v1125, %v1109
  %v1430 = vpack.c.b16 %v1126, %v1110
  %v1431 = vpack.c.b16 %v1127, %v1111
  %v1432 = vpack.c.b16 %v1128, %v1112
  %v1433 = vpack.c.b16 %v1129, %v1113
  %v1434 = vpack.c.b16 %v1130, %v1114
  %v1435 = vpack.c.b16 %v1131, %v1115
  %v1436 = vpack.c.b16 %v1132, %v1116
  %v1437 = vpack.c.b16 %v1133, %v1117
  %v1438 = vpack.c.b16 %v1134, %v1118
  %v1439 = vpack.c.b16 %v1135, %v1119
  %v1440 = vpack.c.b16 %v1136, %v1120
  %v1441 = vpack.c.b16 %v1137, %v1121
  %v1442 = vpack.c.b16 %v1138, %v1122
  %v1443 = vpack.c.b16 %v1139, %v1123
  %v1444 = vpack.c.b16 %v1156, %v1140
  %v1445 = vpack.c.b16 %v1157, %v1141
  %v1446 = vpack.c.b16 %v1158, %v1142
  %v1447 = vpack.c.b16 %v1159, %v1143
  %v1448 = vpack.c.b16 %v1160, %v1144
  %v1449 = vpack.c.b16 %v1161, %v1145
  %v1450 = vpack.c.b16 %v1162, %v1146
  %v1451 = vpack.c.b16 %v1163, %v1147
  %v1452 = vpack.c.b16 %v1164, %v1148
  %v1453 = vpack.c.b16 %v1165, %v1149
  %v1454 = vpack.c.b16 %v1166, %v1150
  %v1455 = vpack.c.b16 %v1167, %v1151
  %v1456 = vpack.c.b16 %v1168, %v1152
  %v1457 = vpack.c.b16 %v1169, %v1153
  %v1458 = vpack.c.b16 %v1170, %v1154
  %v1459 = vpack.c.b16 %v1171, %v1155
  %v1460 = vpack.c.b16 %v1188, %v1172
  %v1461 = vpack.c.b16 %v1189, %v1173
  %v1462 = vpack.c.b16 %v1190, %v1174
  %v1463 = vpack.c.b16 %v1191, %v1175
  %v1464 = vpack.c.b16 %v1192, %v1176
  %v1465 = vpack.c.b16 %v1193, %v1177
  %v1466 = vpack.c.b16 %v1194, %v1178
  %v1467 = vpack.c.b16 %v1195, %v1179
  %v1468 = vpack.c.b16 %v1196, %v1180
  %v1469 = vpack.c.b16 %v1197, %v1181
  %v1470 = vpack.c.b16 %v1198, %v1182
  %v1471 = vpack.c.b16 %v1199, %v1183
  %v1472 = vpack.c.b16 %v1200, %v1184
  %v1473 = vpack.c.b16 %v1201, %v1185
  %v1474 = vpack.c.b16 %v1202, %v1186
  %v1475 = vpack.c.b16 %v1203, %v1187
  %v1476 = vpack.c.b16 %v1220, %v1204
  %v1477 = vpack.c.b16 %v1221, %v1205
  %v1478 = vpack.c.b16 %v1222, %v1206
  %v1479 = vpack.c.b16 %v1223, %v1207
  %v1480 = vpack.c.b16 %v1224, %v1208
  %v1481 = vpack.c.b16 %v1225, %v1209
  %v1482 = vpack.c.b16 %v1226, %v1210
  %v1483 = vpack.c.b16 %v1227, %v1211
  %v1484 = vpack.c.b16 %v1228, %v1212
  %v1485 = vpack.c.b16 %v1229, %v1213
  %v1486 = vpack.c.b16 %v1230, %v1214
  %v1487 = vpack.c.b16 %v1231, %v1215
  %v1488 = vpack.c.b16 %v1232, %v1216
  %v1489 = vpack.c.b16 %v1233, %v1217
  %v1490 = vpack.c.b16 %v1234, %v1218
  %v1491 = vpack.c.b16 %v1235, %v1219
  %1748 = vmatprep.subr.bf16.mxu0 %v1237
  %1749 = vmatpush1.bf16.msra.mxu0 %v1236
  %1750 = vmatprep.subr.bf16.mxu0 %v1253
  %1751 = vmatpush1.bf16.msra.mxu0 %v1252
  %1752 = vmatprep.subr.bf16.mxu0 %v1269
  %1753 = vmatpush1.bf16.msra.mxu0 %v1268
  %1754 = vmatprep.subr.bf16.mxu0 %v1285
  %1755 = vmatpush1.bf16.msra.mxu0 %v1284
  %1756 = vmatprep.subr.bf16.mxu0 %v1301
  %1757 = vmatpush1.bf16.msra.mxu0 %v1300
  %1758 = vmatprep.subr.bf16.mxu0 %v1317
  %1759 = vmatpush1.bf16.msra.mxu0 %v1316
  %1760 = vmatprep.subr.bf16.mxu0 %v1333
  %1761 = vmatpush1.bf16.msra.mxu0 %v1332
  %1762 = vmatprep.subr.bf16.mxu0 %v1349
  %1763 = vmatpush1.bf16.msra.mxu0 %v1348
  %1764 = vmatprep.subr.bf16.mxu0 %v1365
  %1765 = vmatpush1.bf16.msra.mxu0 %v1364
  %1766 = vmatprep.subr.bf16.mxu0 %v1381
  %1767 = vmatpush1.bf16.msra.mxu0 %v1380
  %1768 = vmatprep.subr.bf16.mxu0 %v1397
  %1769 = vmatpush1.bf16.msra.mxu0 %v1396
  %1770 = vmatprep.subr.bf16.mxu0 %v1413
  %1771 = vmatpush1.bf16.msra.mxu0 %v1412
  %1772 = vmatprep.subr.bf16.mxu0 %v1429
  %1773 = vmatpush1.bf16.msra.mxu0 %v1428
  %1774 = vmatprep.subr.bf16.mxu0 %v1445
  %1775 = vmatpush1.bf16.msra.mxu0 %v1444
  %1776 = vmatprep.subr.bf16.mxu0 %v1461
  %1777 = vmatpush1.bf16.msra.mxu0 %v1460
  %1778 = vmatprep.subr.bf16.mxu0 %v1477
  %1779 = vmatpush1.bf16.msra.mxu0 %v1476
  %1780 = vmatprep.mubr.bf16.mxu0 %v127
  %1781 = vmatmul.mubr.bf16.gmra.mrb[0].mxu0 %v126
  %v1782 = vpop.f32.mrb[0].mxu0
  %v1783 = vadd.f32 %v391, %v1782
  %v1784 = vpop.f32.mrb[0].mxu0
  %v1785 = vadd.f32 %v395, %v1784
  %v1786 = vpop.f32.mrb[0].mxu0
  %v1787 = vpop.f32.mrb[0].mxu0
  %1788 = vdwg.mxu0
  %1789 = vmatprep.subr.bf16.mxu0 %v1239
  %1790 = vmatpush1.bf16.msra.mxu0 %v1238
  %1791 = vmatprep.subr.bf16.mxu0 %v1255
  %1792 = vmatpush1.bf16.msra.mxu0 %v1254
  %1793 = vmatprep.subr.bf16.mxu0 %v1271
  %1794 = vmatpush1.bf16.msra.mxu0 %v1270
  %1795 = vmatprep.subr.bf16.mxu0 %v1287
  %1796 = vmatpush1.bf16.msra.mxu0 %v1286
  %1797 = vmatprep.subr.bf16.mxu0 %v1303
  %1798 = vmatpush1.bf16.msra.mxu0 %v1302
  %1799 = vmatprep.subr.bf16.mxu0 %v1319
  %1800 = vmatpush1.bf16.msra.mxu0 %v1318
  %1801 = vmatprep.subr.bf16.mxu0 %v1335
  %1802 = vmatpush1.bf16.msra.mxu0 %v1334
  %1803 = vmatprep.subr.bf16.mxu0 %v1351
  %1804 = vmatpush1.bf16.msra.mxu0 %v1350
  %1805 = vmatprep.subr.bf16.mxu0 %v1367
  %1806 = vmatpush1.bf16.msra.mxu0 %v1366
  %1807 = vmatprep.subr.bf16.mxu0 %v1383
  %1808 = vmatpush1.bf16.msra.mxu0 %v1382
  %1809 = vmatprep.subr.bf16.mxu0 %v1399
  %1810 = vmatpush1.bf16.msra.mxu0 %v1398
  %1811 = vmatprep.subr.bf16.mxu0 %v1415
  %1812 = vmatpush1.bf16.msra.mxu0 %v1414
  %1813 = vmatprep.subr.bf16.mxu0 %v1431
  %1814 = vmatpush1.bf16.msra.mxu0 %v1430
  %1815 = vmatprep.subr.bf16.mxu0 %v1447
  %1816 = vmatpush1.bf16.msra.mxu0 %v1446
  %1817 = vmatprep.subr.bf16.mxu0 %v1463
  %1818 = vmatpush1.bf16.msra.mxu0 %v1462
  %1819 = vmatprep.subr.bf16.mxu0 %v1479
  %1820 = vmatpush1.bf16.msra.mxu0 %v1478
  %1821 = vmatprep.mubr.bf16.mxu0 %v127
  %1822 = vmatmul.mubr.bf16.gmra.mrb[0].mxu0 %v126
  %v1823 = vpop.f32.mrb[0].mxu0
  %v1824 = vadd.f32 %v399, %v1823
  %v1825 = vpop.f32.mrb[0].mxu0
  %v1826 = vadd.f32 %v403, %v1825
  %v1827 = vpop.f32.mrb[0].mxu0
  %v1828 = vpop.f32.mrb[0].mxu0
  %1829 = vdwg.mxu0
  %1830 = vmatprep.subr.bf16.mxu0 %v1241
  %1831 = vmatpush1.bf16.msra.mxu0 %v1240
  %1832 = vmatprep.subr.bf16.mxu0 %v1257
  %1833 = vmatpush1.bf16.msra.mxu0 %v1256
  %1834 = vmatprep.subr.bf16.mxu0 %v1273
  %1835 = vmatpush1.bf16.msra.mxu0 %v1272
  %1836 = vmatprep.subr.bf16.mxu0 %v1289
  %1837 = vmatpush1.bf16.msra.mxu0 %v1288
  %1838 = vmatprep.subr.bf16.mxu0 %v1305
  %1839 = vmatpush1.bf16.msra.mxu0 %v1304
  %1840 = vmatprep.subr.bf16.mxu0 %v1321
  %1841 = vmatpush1.bf16.msra.mxu0 %v1320
  %1842 = vmatprep.subr.bf16.mxu0 %v1337
  %1843 = vmatpush1.bf16.msra.mxu0 %v1336
  %1844 = vmatprep.subr.bf16.mxu0 %v1353
  %1845 = vmatpush1.bf16.msra.mxu0 %v1352
  %1846 = vmatprep.subr.bf16.mxu0 %v1369
  %1847 = vmatpush1.bf16.msra.mxu0 %v1368
  %1848 = vmatprep.subr.bf16.mxu0 %v1385
  %1849 = vmatpush1.bf16.msra.mxu0 %v1384
  %1850 = vmatprep.subr.bf16.mxu0 %v1401
  %1851 = vmatpush1.bf16.msra.mxu0 %v1400
  %1852 = vmatprep.subr.bf16.mxu0 %v1417
  %1853 = vmatpush1.bf16.msra.mxu0 %v1416
  %1854 = vmatprep.subr.bf16.mxu0 %v1433
  %1855 = vmatpush1.bf16.msra.mxu0 %v1432
  %1856 = vmatprep.subr.bf16.mxu0 %v1449
  %1857 = vmatpush1.bf16.msra.mxu0 %v1448
  %1858 = vmatprep.subr.bf16.mxu0 %v1465
  %1859 = vmatpush1.bf16.msra.mxu0 %v1464
  %1860 = vmatprep.subr.bf16.mxu0 %v1481
  %1861 = vmatpush1.bf16.msra.mxu0 %v1480
  %1862 = vmatprep.mubr.bf16.mxu0 %v127
  %1863 = vmatmul.mubr.bf16.gmra.mrb[0].mxu0 %v126
  %v1864 = vpop.f32.mrb[0].mxu0
  %v1865 = vadd.f32 %v407, %v1864
  %v1866 = vpop.f32.mrb[0].mxu0
  %v1867 = vadd.f32 %v411, %v1866
  %v1868 = vpop.f32.mrb[0].mxu0
  %v1869 = vpop.f32.mrb[0].mxu0
  %1870 = vdwg.mxu0
  %1871 = vmatprep.subr.bf16.mxu0 %v1243
  %1872 = vmatpush1.bf16.msra.mxu0 %v1242
  %1873 = vmatprep.subr.bf16.mxu0 %v1259
  %1874 = vmatpush1.bf16.msra.mxu0 %v1258
  %1875 = vmatprep.subr.bf16.mxu0 %v1275
  %1876 = vmatpush1.bf16.msra.mxu0 %v1274
  %1877 = vmatprep.subr.bf16.mxu0 %v1291
  %1878 = vmatpush1.bf16.msra.mxu0 %v1290
  %1879 = vmatprep.subr.bf16.mxu0 %v1307
  %1880 = vmatpush1.bf16.msra.mxu0 %v1306
  %1881 = vmatprep.subr.bf16.mxu0 %v1323
  %1882 = vmatpush1.bf16.msra.mxu0 %v1322
  %1883 = vmatprep.subr.bf16.mxu0 %v1339
  %1884 = vmatpush1.bf16.msra.mxu0 %v1338
  %1885 = vmatprep.subr.bf16.mxu0 %v1355
  %1886 = vmatpush1.bf16.msra.mxu0 %v1354
  %1887 = vmatprep.subr.bf16.mxu0 %v1371
  %1888 = vmatpush1.bf16.msra.mxu0 %v1370
  %1889 = vmatprep.subr.bf16.mxu0 %v1387
  %1890 = vmatpush1.bf16.msra.mxu0 %v1386
  %1891 = vmatprep.subr.bf16.mxu0 %v1403
  %1892 = vmatpush1.bf16.msra.mxu0 %v1402
  %1893 = vmatprep.subr.bf16.mxu0 %v1419
  %1894 = vmatpush1.bf16.msra.mxu0 %v1418
  %1895 = vmatprep.subr.bf16.mxu0 %v1435
  %1896 = vmatpush1.bf16.msra.mxu0 %v1434
  %1897 = vmatprep.subr.bf16.mxu0 %v1451
  %1898 = vmatpush1.bf16.msra.mxu0 %v1450
  %1899 = vmatprep.subr.bf16.mxu0 %v1467
  %1900 = vmatpush1.bf16.msra.mxu0 %v1466
  %1901 = vmatprep.subr.bf16.mxu0 %v1483
  %1902 = vmatpush1.bf16.msra.mxu0 %v1482
  %1903 = vmatprep.mubr.bf16.mxu0 %v127
  %1904 = vmatmul.mubr.bf16.gmra.mrb[0].mxu0 %v126
  %v1905 = vpop.f32.mrb[0].mxu0
  %v1906 = vadd.f32 %v415, %v1905
  %v1907 = vpop.f32.mrb[0].mxu0
  %v1908 = vadd.f32 %v419, %v1907
  %v1909 = vpop.f32.mrb[0].mxu0
  %v1910 = vpop.f32.mrb[0].mxu0
  %1911 = vdwg.mxu0
  %1912 = vmatprep.subr.bf16.mxu0 %v1245
  %1913 = vmatpush1.bf16.msra.mxu0 %v1244
  %1914 = vmatprep.subr.bf16.mxu0 %v1261
  %1915 = vmatpush1.bf16.msra.mxu0 %v1260
  %1916 = vmatprep.subr.bf16.mxu0 %v1277
  %1917 = vmatpush1.bf16.msra.mxu0 %v1276
  %1918 = vmatprep.subr.bf16.mxu0 %v1293
  %1919 = vmatpush1.bf16.msra.mxu0 %v1292
  %1920 = vmatprep.subr.bf16.mxu0 %v1309
  %1921 = vmatpush1.bf16.msra.mxu0 %v1308
  %1922 = vmatprep.subr.bf16.mxu0 %v1325
  %1923 = vmatpush1.bf16.msra.mxu0 %v1324
  %1924 = vmatprep.subr.bf16.mxu0 %v1341
  %1925 = vmatpush1.bf16.msra.mxu0 %v1340
  %1926 = vmatprep.subr.bf16.mxu0 %v1357
  %1927 = vmatpush1.bf16.msra.mxu0 %v1356
  %1928 = vmatprep.subr.bf16.mxu0 %v1373
  %1929 = vmatpush1.bf16.msra.mxu0 %v1372
  %1930 = vmatprep.subr.bf16.mxu0 %v1389
  %1931 = vmatpush1.bf16.msra.mxu0 %v1388
  %1932 = vmatprep.subr.bf16.mxu0 %v1405
  %1933 = vmatpush1.bf16.msra.mxu0 %v1404
  %1934 = vmatprep.subr.bf16.mxu0 %v1421
  %1935 = vmatpush1.bf16.msra.mxu0 %v1420
  %1936 = vmatprep.subr.bf16.mxu0 %v1437
  %1937 = vmatpush1.bf16.msra.mxu0 %v1436
  %1938 = vmatprep.subr.bf16.mxu0 %v1453
  %1939 = vmatpush1.bf16.msra.mxu0 %v1452
  %1940 = vmatprep.subr.bf16.mxu0 %v1469
  %1941 = vmatpush1.bf16.msra.mxu0 %v1468
  %1942 = vmatprep.subr.bf16.mxu0 %v1485
  %1943 = vmatpush1.bf16.msra.mxu0 %v1484
  %1944 = vmatprep.mubr.bf16.mxu0 %v127
  %1945 = vmatmul.mubr.bf16.gmra.mrb[0].mxu0 %v126
  %v1946 = vpop.f32.mrb[0].mxu0
  %v1947 = vadd.f32 %v423, %v1946
  %v1948 = vpop.f32.mrb[0].mxu0
  %v1949 = vadd.f32 %v427, %v1948
  %v1950 = vpop.f32.mrb[0].mxu0
  %v1951 = vpop.f32.mrb[0].mxu0
  %1952 = vdwg.mxu0
  %1953 = vmatprep.subr.bf16.mxu0 %v1247
  %1954 = vmatpush1.bf16.msra.mxu0 %v1246
  %1955 = vmatprep.subr.bf16.mxu0 %v1263
  %1956 = vmatpush1.bf16.msra.mxu0 %v1262
  %1957 = vmatprep.subr.bf16.mxu0 %v1279
  %1958 = vmatpush1.bf16.msra.mxu0 %v1278
  %1959 = vmatprep.subr.bf16.mxu0 %v1295
  %1960 = vmatpush1.bf16.msra.mxu0 %v1294
  %1961 = vmatprep.subr.bf16.mxu0 %v1311
  %1962 = vmatpush1.bf16.msra.mxu0 %v1310
  %1963 = vmatprep.subr.bf16.mxu0 %v1327
  %1964 = vmatpush1.bf16.msra.mxu0 %v1326
  %1965 = vmatprep.subr.bf16.mxu0 %v1343
  %1966 = vmatpush1.bf16.msra.mxu0 %v1342
  %1967 = vmatprep.subr.bf16.mxu0 %v1359
  %1968 = vmatpush1.bf16.msra.mxu0 %v1358
  %1969 = vmatprep.subr.bf16.mxu0 %v1375
  %1970 = vmatpush1.bf16.msra.mxu0 %v1374
  %1971 = vmatprep.subr.bf16.mxu0 %v1391
  %1972 = vmatpush1.bf16.msra.mxu0 %v1390
  %1973 = vmatprep.subr.bf16.mxu0 %v1407
  %1974 = vmatpush1.bf16.msra.mxu0 %v1406
  %1975 = vmatprep.subr.bf16.mxu0 %v1423
  %1976 = vmatpush1.bf16.msra.mxu0 %v1422
  %1977 = vmatprep.subr.bf16.mxu0 %v1439
  %1978 = vmatpush1.bf16.msra.mxu0 %v1438
  %1979 = vmatprep.subr.bf16.mxu0 %v1455
  %1980 = vmatpush1.bf16.msra.mxu0 %v1454
  %1981 = vmatprep.subr.bf16.mxu0 %v1471
  %1982 = vmatpush1.bf16.msra.mxu0 %v1470
  %1983 = vmatprep.subr.bf16.mxu0 %v1487
  %1984 = vmatpush1.bf16.msra.mxu0 %v1486
  %1985 = vmatprep.mubr.bf16.mxu0 %v127
  %1986 = vmatmul.mubr.bf16.gmra.mrb[0].mxu0 %v126
  %v1987 = vpop.f32.mrb[0].mxu0
  %v1988 = vadd.f32 %v431, %v1987
  %v1989 = vpop.f32.mrb[0].mxu0
  %v1990 = vadd.f32 %v435, %v1989
  %v1991 = vpop.f32.mrb[0].mxu0
  %v1992 = vpop.f32.mrb[0].mxu0
  %1993 = vdwg.mxu0
  %1994 = vmatprep.subr.bf16.mxu0 %v1249
  %1995 = vmatpush1.bf16.msra.mxu0 %v1248
  %1996 = vmatprep.subr.bf16.mxu0 %v1265
  %1997 = vmatpush1.bf16.msra.mxu0 %v1264
  %1998 = vmatprep.subr.bf16.mxu0 %v1281
  %1999 = vmatpush1.bf16.msra.mxu0 %v1280
  %2000 = vmatprep.subr.bf16.mxu0 %v1297
  %2001 = vmatpush1.bf16.msra.mxu0 %v1296
  %2002 = vmatprep.subr.bf16.mxu0 %v1313
  %2003 = vmatpush1.bf16.msra.mxu0 %v1312
  %2004 = vmatprep.subr.bf16.mxu0 %v1329
  %2005 = vmatpush1.bf16.msra.mxu0 %v1328
  %2006 = vmatprep.subr.bf16.mxu0 %v1345
  %2007 = vmatpush1.bf16.msra.mxu0 %v1344
  %2008 = vmatprep.subr.bf16.mxu0 %v1361
  %2009 = vmatpush1.bf16.msra.mxu0 %v1360
  %2010 = vmatprep.subr.bf16.mxu0 %v1377
  %2011 = vmatpush1.bf16.msra.mxu0 %v1376
  %2012 = vmatprep.subr.bf16.mxu0 %v1393
  %2013 = vmatpush1.bf16.msra.mxu0 %v1392
  %2014 = vmatprep.subr.bf16.mxu0 %v1409
  %2015 = vmatpush1.bf16.msra.mxu0 %v1408
  %2016 = vmatprep.subr.bf16.mxu0 %v1425
  %2017 = vmatpush1.bf16.msra.mxu0 %v1424
  %2018 = vmatprep.subr.bf16.mxu0 %v1441
  %2019 = vmatpush1.bf16.msra.mxu0 %v1440
  %2020 = vmatprep.subr.bf16.mxu0 %v1457
  %2021 = vmatpush1.bf16.msra.mxu0 %v1456
  %2022 = vmatprep.subr.bf16.mxu0 %v1473
  %2023 = vmatpush1.bf16.msra.mxu0 %v1472
  %2024 = vmatprep.subr.bf16.mxu0 %v1489
  %2025 = vmatpush1.bf16.msra.mxu0 %v1488
  %2026 = vmatprep.mubr.bf16.mxu0 %v127
  %2027 = vmatmul.mubr.bf16.gmra.mrb[0].mxu0 %v126
  %v2028 = vpop.f32.mrb[0].mxu0
  %v2029 = vadd.f32 %v439, %v2028
  %v2030 = vpop.f32.mrb[0].mxu0
  %v2031 = vadd.f32 %v443, %v2030
  %v2032 = vpop.f32.mrb[0].mxu0
  %v2033 = vpop.f32.mrb[0].mxu0
  %2034 = vdwg.mxu0
  %2035 = vmatprep.subr.bf16.mxu0 %v1251
  %2036 = vmatpush1.bf16.msra.mxu0 %v1250
  %2037 = vmatprep.subr.bf16.mxu0 %v1267
  %2038 = vmatpush1.bf16.msra.mxu0 %v1266
  %2039 = vmatprep.subr.bf16.mxu0 %v1283
  %2040 = vmatpush1.bf16.msra.mxu0 %v1282
  %2041 = vmatprep.subr.bf16.mxu0 %v1299
  %2042 = vmatpush1.bf16.msra.mxu0 %v1298
  %2043 = vmatprep.subr.bf16.mxu0 %v1315
  %2044 = vmatpush1.bf16.msra.mxu0 %v1314
  %2045 = vmatprep.subr.bf16.mxu0 %v1331
  %2046 = vmatpush1.bf16.msra.mxu0 %v1330
  %2047 = vmatprep.subr.bf16.mxu0 %v1347
  %2048 = vmatpush1.bf16.msra.mxu0 %v1346
  %2049 = vmatprep.subr.bf16.mxu0 %v1363
  %2050 = vmatpush1.bf16.msra.mxu0 %v1362
  %2051 = vmatprep.subr.bf16.mxu0 %v1379
  %2052 = vmatpush1.bf16.msra.mxu0 %v1378
  %2053 = vmatprep.subr.bf16.mxu0 %v1395
  %2054 = vmatpush1.bf16.msra.mxu0 %v1394
  %2055 = vmatprep.subr.bf16.mxu0 %v1411
  %2056 = vmatpush1.bf16.msra.mxu0 %v1410
  %2057 = vmatprep.subr.bf16.mxu0 %v1427
  %2058 = vmatpush1.bf16.msra.mxu0 %v1426
  %2059 = vmatprep.subr.bf16.mxu0 %v1443
  %2060 = vmatpush1.bf16.msra.mxu0 %v1442
  %2061 = vmatprep.subr.bf16.mxu0 %v1459
  %2062 = vmatpush1.bf16.msra.mxu0 %v1458
  %2063 = vmatprep.subr.bf16.mxu0 %v1475
  %2064 = vmatpush1.bf16.msra.mxu0 %v1474
  %2065 = vmatprep.subr.bf16.mxu0 %v1491
  %2066 = vmatpush1.bf16.msra.mxu0 %v1490
  %2067 = vmatprep.mubr.bf16.mxu0 %v127
  %2068 = vmatmul.mubr.bf16.gmra.mrb[0].mxu0 %v126
  %v2069 = vpop.f32.mrb[0].mxu0
  %v2070 = vadd.f32 %v447, %v2069
  %v2071 = vpop.f32.mrb[0].mxu0
  %v2072 = vadd.f32 %v451, %v2071
  %v2073 = vpop.f32.mrb[0].mxu0
  %v2074 = vpop.f32.mrb[0].mxu0
  %2075 = vdwg.mxu0
  %v2076 = vxor.u32 %v1783, 2147483648
  %v2077 = vxor.u32 %v1785, 2147483648
  %v2078 = vxor.u32 %v1824, 2147483648
  %v2079 = vxor.u32 %v1826, 2147483648
  %v2080 = vxor.u32 %v1865, 2147483648
  %v2081 = vxor.u32 %v1867, 2147483648
  %v2082 = vxor.u32 %v1906, 2147483648
  %v2083 = vxor.u32 %v1908, 2147483648
  %v2084 = vxor.u32 %v1947, 2147483648
  %v2085 = vxor.u32 %v1949, 2147483648
  %v2086 = vxor.u32 %v1988, 2147483648
  %v2087 = vxor.u32 %v1990, 2147483648
  %v2088 = vxor.u32 %v2029, 2147483648
  %v2089 = vxor.u32 %v2031, 2147483648
  %v2090 = vxor.u32 %v2070, 2147483648
  %v2091 = vxor.u32 %v2072, 2147483648
  %v2092 = vmul.f32 %v2076, 1.442695
  %v2093 = vpow.pop %v2092
  %v2094 = vmul.f32 %v2077, 1.442695
  %v2095 = vpow.pop %v2094
  %v2096 = vmul.f32 %v2078, 1.442695
  %v2097 = vpow.pop %v2096
  %v2098 = vmul.f32 %v2079, 1.442695
  %v2099 = vpow.pop %v2098
  %v2100 = vmul.f32 %v2080, 1.442695
  %v2101 = vpow.pop %v2100
  %v2102 = vmul.f32 %v2081, 1.442695
  %v2103 = vpow.pop %v2102
  %v2104 = vmul.f32 %v2082, 1.442695
  %v2105 = vpow.pop %v2104
  %v2106 = vmul.f32 %v2083, 1.442695
  %v2107 = vpow.pop %v2106
  %v2108 = vmul.f32 %v2084, 1.442695
  %v2109 = vpow.pop %v2108
  %v2110 = vmul.f32 %v2085, 1.442695
  %v2111 = vpow.pop %v2110
  %v2112 = vmul.f32 %v2086, 1.442695
  %v2113 = vpow.pop %v2112
  %v2114 = vmul.f32 %v2087, 1.442695
  %v2115 = vpow.pop %v2114
  %v2116 = vmul.f32 %v2088, 1.442695
  %v2117 = vpow.pop %v2116
  %v2118 = vmul.f32 %v2089, 1.442695
  %v2119 = vpow.pop %v2118
  %v2120 = vmul.f32 %v2090, 1.442695
  %v2121 = vpow.pop %v2120
  %v2122 = vmul.f32 %v2091, 1.442695
  %v2123 = vpow.pop %v2122
  %v2124 = vadd.f32 %v2093, 1.0
  %v2125 = vadd.f32 %v2095, 1.0
  %v2126 = vadd.f32 %v2097, 1.0
  %v2127 = vadd.f32 %v2099, 1.0
  %v2128 = vadd.f32 %v2101, 1.0
  %v2129 = vadd.f32 %v2103, 1.0
  %v2130 = vadd.f32 %v2105, 1.0
  %v2131 = vadd.f32 %v2107, 1.0
  %v2132 = vadd.f32 %v2109, 1.0
  %v2133 = vadd.f32 %v2111, 1.0
  %v2134 = vadd.f32 %v2113, 1.0
  %v2135 = vadd.f32 %v2115, 1.0
  %v2136 = vadd.f32 %v2117, 1.0
  %v2137 = vadd.f32 %v2119, 1.0
  %v2138 = vadd.f32 %v2121, 1.0
  %v2139 = vadd.f32 %v2123, 1.0
  %v2140 = vrcp.pop %v2124
  %v2141 = vmul.f32 1.0, %v2140
  %v2142 = vrcp.pop %v2125
  %v2143 = vmul.f32 1.0, %v2142
  %v2144 = vrcp.pop %v2126
  %v2145 = vmul.f32 1.0, %v2144
  %v2146 = vrcp.pop %v2127
  %v2147 = vmul.f32 1.0, %v2146
  %v2148 = vrcp.pop %v2128
  %v2149 = vmul.f32 1.0, %v2148
  %v2150 = vrcp.pop %v2129
  %v2151 = vmul.f32 1.0, %v2150
  %v2152 = vrcp.pop %v2130
  %v2153 = vmul.f32 1.0, %v2152
  %v2154 = vrcp.pop %v2131
  %v2155 = vmul.f32 1.0, %v2154
  %v2156 = vrcp.pop %v2132
  %v2157 = vmul.f32 1.0, %v2156
  %v2158 = vrcp.pop %v2133
  %v2159 = vmul.f32 1.0, %v2158
  %v2160 = vrcp.pop %v2134
  %v2161 = vmul.f32 1.0, %v2160
  %v2162 = vrcp.pop %v2135
  %v2163 = vmul.f32 1.0, %v2162
  %v2164 = vrcp.pop %v2136
  %v2165 = vmul.f32 1.0, %v2164
  %v2166 = vrcp.pop %v2137
  %v2167 = vmul.f32 1.0, %v2166
  %v2168 = vrcp.pop %v2138
  %v2169 = vmul.f32 1.0, %v2168
  %v2170 = vrcp.pop %v2139
  %v2171 = vmul.f32 1.0, %v2170
  %2172 = vst [vmem:[%s5] sm:$0xff] %v2141
  %2173 = vst [vmem:[%s5 + $0x8] sm:$0xff] %v2143
  %2174 = vst [vmem:[%s5 + $0x10] sm:$0xff] %v2145
  %2175 = vst [vmem:[%s5 + $0x18] sm:$0xff] %v2147
  %2176 = vst [vmem:[%s5 + $0x20] sm:$0xff] %v2149
  %2177 = vst [vmem:[%s5 + $0x28] sm:$0xff] %v2151
  %2178 = vst [vmem:[%s5 + $0x30] sm:$0xff] %v2153
  %2179 = vst [vmem:[%s5 + $0x38] sm:$0xff] %v2155
  %2180 = vst [vmem:[%s5 + $0x40] sm:$0xff] %v2157
  %2181 = vst [vmem:[%s5 + $0x48] sm:$0xff] %v2159
  %2182 = vst [vmem:[%s5 + $0x50] sm:$0xff] %v2161
  %2183 = vst [vmem:[%s5 + $0x58] sm:$0xff] %v2163
  %2184 = vst [vmem:[%s5 + $0x60] sm:$0xff] %v2165
  %2185 = vst [vmem:[%s5 + $0x68] sm:$0xff] %v2167
  %2186 = vst [vmem:[%s5 + $0x70] sm:$0xff] %v2169
  %2187 = vst [vmem:[%s5 + $0x78] sm:$0xff] %v2171
  // Predicated region
  $region22: #{forward.1} parent=0 // pred_check
    _
  $region23: #{forward.1} parent=0 // pred_check_branch
    %2189 = sbr.rel (0) target = $region25
  $region24: #{forward.1} parent=0 // pred_region
    _
  $region25: #{forward.1} parent=0 // pred_fallthru
    _
  // Predicated region
  $region26: #{forward.1} parent=0 // pred_check
    _
  $region27: #{forward.1} parent=0 // pred_check_branch
    %2191 = sbr.rel (0) target = $region29
  $region28: #{forward.1} parent=0 // pred_region
    _
  $region29: #{forward.1} parent=0 // pred_fallthru
    _

</llo_original>
